<compile_context>
chip_gen: v7x
topology: tpu7x:2x2x1
jax: 0.10.0
libtpu: 0.0.40
codegen_flags: <defaults>
</compile_context>

<pallas_src>
import numpy as np
import jax
import jax.numpy as jnp
from jax.experimental import pallas as pl
from jax.experimental.pallas import tpu as pltpu

# ---- problem sizes (small, consistent with the module) ----------------------
IN_SCALAR_DIM = 16
OUT_SCALAR_DIM = 8
VECTOR_SIZE = 4
N_GVPS = 3
INTERMEDIATE_SCALAR_DIM = 64
N_NODES = 16
OUT_WIDTH = OUT_SCALAR_DIM + 3            # packed output: 8 scalars + xyz

# static per-GVP output dims (last GVP: 1 vector channel, 64 scalar feats)
_GVP_VOUT = tuple(1 if i == N_GVPS - 1 else VECTOR_SIZE for i in range(N_GVPS))
_GVP_FOUT = tuple(INTERMEDIATE_SCALAR_DIM if i == N_GVPS - 1 else IN_SCALAR_DIM
                  for i in range(N_GVPS))

# ---- packed-weight slab layout ----------------------------------------------
# w_gvp[i] is a (SLAB_ROWS, SLAB_COLS) slab per GVP:
#   rows 0:16         cols 0:4            Wg_{i-1}   (zeros for i == 0)
#   rows 0:16         cols 4:4+f_out      Wf_s_i     (scalar part of Wf)
#   rows 16:20        cols 0:f_out        Wf_v_i     (sh part of Wf)
#   row  20           cols 0:4+f_out      [bg_{i-1} | bf_i]
#   rows 21:25        cols 0:4+v_out      [Wh_i | Wh_i @ Wu_i]
# w_tail is (65, 9): rows 0:64 = [Wo | Wg_2], row 64 = [bo | bg_2].
GATE_COLS = VECTOR_SIZE
ROW_WS = 0
ROW_WV = IN_SCALAR_DIM
ROW_BIAS = ROW_WV + VECTOR_SIZE
ROW_WHU = ROW_BIAS + 1
SLAB_ROWS = ROW_WHU + VECTOR_SIZE         # 25
SLAB_COLS = 128


# ---- Pallas kernel ----------------------------------------------------------
def _noise_pred_kernel(s_ref, v_ref, wg_ref, wt_ref, out_ref):
    tn = s_ref.shape[0]
    s = s_ref[...]                                           # (TN, 16) f32
    # fold xyz into the row (sublane) axis: (3, TN, V) -> (3*TN, V)
    # (TN is a multiple of 8, so this reshape is layout-preserving).
    v = v_ref[...].reshape(3 * tn, VECTOR_SIZE)
    vu = None                                                # pending Vu of prev GVP

    for i in range(N_GVPS):                                  # statically unrolled
        f_out = _GVP_FOUT[i]
        v_out = _GVP_VOUT[i]

        # Fused scalar-path matmul + bias:
        #   tmp = s_i @ [Wg_{i-1} | Wf_s_i] + [bg_{i-1} | bf_i]
        # gate columns come FIRST so the gate slice is an offset-0 read; the
        # feats slice (offset 4) has slack behind the vector-path chain.
        ws = wg_ref[i, 0:IN_SCALAR_DIM, 0:GATE_COLS + f_out]          # (16, 4+f_out)
        brow = wg_ref[i, ROW_BIAS:ROW_BIAS + 1, 0:GATE_COLS + f_out]  # (1,  4+f_out)
        tmp = jnp.dot(s, ws, preferred_element_type=jnp.float32) + brow

        if i > 0:
            # previous GVP's vector gate (sigmoid; last GVP handled after loop)
            gate = jax.nn.sigmoid(tmp[:, :GATE_COLS])                 # (TN, 4)
            v = (vu.reshape(3, tn, VECTOR_SIZE) * gate[None]).reshape(
                3 * tn, VECTOR_SIZE)

        # Vector path: ONE small MXU push gives [Vh | Vu]  (Wu folded into Wh
        # at pack time, so Vu = V @ (Wh @ Wu)).
        whu = wg_ref[i, ROW_WHU:ROW_WHU + VECTOR_SIZE,
                     0:VECTOR_SIZE + v_out]                           # (4, 4+v_out)
        hv = jnp.dot(v, whu, preferred_element_type=jnp.float32)      # (3TN, 4+v_out)
        vh = hv[:, :VECTOR_SIZE]
        vu = hv[:, VECTOR_SIZE:VECTOR_SIZE + v_out]                   # (3TN, v_out)

        # sh = ||Vh||_2 over xyz (the three row groups -> distinct vregs)
        vh3 = vh.reshape(3, tn, VECTOR_SIZE)
        # TODO(synk): canonical GVP uses a clamped/safe norm (_norm_no_nan with
        # eps); the module's forward (and the reference here) uses a plain sqrt.
        sh = jnp.sqrt(vh3[0] * vh3[0] + vh3[1] * vh3[1] + vh3[2] * vh3[2])  # (TN, 4)

        # feats = SiLU(pre_s + sh @ Wf_v)
        wfv = wg_ref[i, ROW_WV:ROW_WV + VECTOR_SIZE, 0:f_out]         # (4, f_out)
        pre = (tmp[:, GATE_COLS:GATE_COLS + f_out]
               + jnp.dot(sh, wfv, preferred_element_type=jnp.float32))
        s = pre * jax.nn.sigmoid(pre)                                 # SiLU -> feats_i

    # Final matmul: lanes 0:8 = scalars (Wo, bo), lane 8 = last GVP's gate
    # (Wg_2, bg_2, identity activation).  One push, one bias add.
    outp = (jnp.dot(s, wt_ref[0:INTERMEDIATE_SCALAR_DIM, :],
                    preferred_element_type=jnp.float32)
            + wt_ref[INTERMEDIATE_SCALAR_DIM:, :])                    # (TN, 9)
    gate2 = outp[:, OUT_SCALAR_DIM:OUT_SCALAR_DIM + 1]                # (TN, 1)
    vfin = vu.reshape(3, tn, 1) * gate2[None]                         # (3, TN, 1)

    # lane-dense packed output: lanes 0..7 scalars, lanes 8..10 vector xyz.
    out_ref[...] = jnp.concatenate(
        [outp[:, :OUT_SCALAR_DIM], vfin[0], vfin[1], vfin[2]],
        axis=-1).astype(out_ref.dtype)


# ---- one-time weight packing (host-side, NOT in the per-call path) ----------
def pack_params(gvp_params, wo, bo):
    """Pack the 20 module tensors into 2 slabs.  Call ONCE at init/load time."""
    w_gvp = np.zeros((N_GVPS, SLAB_ROWS, SLAB_COLS), np.float32)
    for i, (wh, wu, wf, bf, _wg, _bg) in enumerate(gvp_params):
        f_out = _GVP_FOUT[i]
        v_out = _GVP_VOUT[i]
        wh = np.asarray(wh, np.float32)
        wu = np.asarray(wu, np.float32)
        wf = np.asarray(wf, np.float32)
        bf = np.asarray(bf, np.float32)
        assert wh.shape == (VECTOR_SIZE, VECTOR_SIZE)
        assert wf.shape == (IN_SCALAR_DIM + VECTOR_SIZE, f_out)
        if i > 0:
            wg_prev = np.asarray(gvp_params[i - 1][4], np.float32)   # (16, 4)
            bg_prev = np.asarray(gvp_params[i - 1][5], np.float32)   # (1, 4)
            w_gvp[i, 0:IN_SCALAR_DIM, 0:GATE_COLS] = wg_prev
            w_gvp[i, ROW_BIAS, 0:GATE_COLS] = bg_prev[0]
        w_gvp[i, 0:IN_SCALAR_DIM, GATE_COLS:GATE_COLS + f_out] = wf[:IN_SCALAR_DIM]
        w_gvp[i, ROW_WV:ROW_WV + VECTOR_SIZE, 0:f_out] = wf[IN_SCALAR_DIM:]
        w_gvp[i, ROW_BIAS, GATE_COLS:GATE_COLS + f_out] = bf[0]
        w_gvp[i, ROW_WHU:ROW_WHU + VECTOR_SIZE, 0:VECTOR_SIZE] = wh
        w_gvp[i, ROW_WHU:ROW_WHU + VECTOR_SIZE,
              VECTOR_SIZE:VECTOR_SIZE + v_out] = wh @ wu             # fold Wu into Wh

    wg_last = np.asarray(gvp_params[-1][4], np.float32)              # (64, 1)
    bg_last = np.asarray(gvp_params[-1][5], np.float32)              # (1, 1)
    w_tail = np.zeros((INTERMEDIATE_SCALAR_DIM + 1, OUT_SCALAR_DIM + 1), np.float32)
    w_tail[:INTERMEDIATE_SCALAR_DIM, :OUT_SCALAR_DIM] = np.asarray(wo, np.float32)
    w_tail[:INTERMEDIATE_SCALAR_DIM, OUT_SCALAR_DIM] = wg_last[:, 0]
    w_tail[INTERMEDIATE_SCALAR_DIM, :OUT_SCALAR_DIM] = np.asarray(bo, np.float32)[0]
    w_tail[INTERMEDIATE_SCALAR_DIM, OUT_SCALAR_DIM] = bg_last[0, 0]
    return jnp.asarray(w_gvp), jnp.asarray(w_tail)


# ---- wrapper ----------------------------------------------------------------
def noise_prediction_block(scalars, vectors, w_gvp, w_tail, *, num_tiles=1):
    """scalars: (N, 16) f32; vectors: (N, Vdim, 3) f32 (PyTorch layout).

    w_gvp / w_tail come from pack_params() (called once, not per forward).
    num_tiles=1 (single grid step) is best at these sizes on v5e/v6e/v7x — the
    kernel is grid-step/DMA-overhead bound.  Batching more rows (larger N)
    into one call is the largest remaining speedup; kernel time is ~flat up to
    several hundred rows.
    """
    n = scalars.shape[0]
    assert n % num_tiles == 0
    tile_n = n // num_tiles
    assert tile_n % 8 == 0, "row tile must be a multiple of 8 sublanes"

    # (N, V, 3) -> coordinate-major (3, N, V); tiny transform that lives inside
    # the same jit as the pallas_call (single dispatch), not a separate call.
    v_cm = jnp.transpose(vectors, (2, 0, 1))

    # Two consolidated weight slabs, whole-array resident in VMEM.
    weight_spec = pl.BlockSpec(memory_space=pltpu.MemorySpace.VMEM)

    packed_out = pl.pallas_call(
        _noise_pred_kernel,
        out_shape=jax.ShapeDtypeStruct((n, OUT_WIDTH), jnp.float32),
        grid=(num_tiles,),
        in_specs=[
            pl.BlockSpec((tile_n, IN_SCALAR_DIM), lambda i: (i, 0)),
            pl.BlockSpec((3, tile_n, VECTOR_SIZE), lambda i: (0, i, 0)),
            weight_spec,
            weight_spec,
        ],
        out_specs=pl.BlockSpec((tile_n, OUT_WIDTH), lambda i: (i, 0)),
        compiler_params=pltpu.CompilerParams(dimension_semantics=("arbitrary",)),
        cost_estimate=pl.CostEstimate(flops=100_000, transcendentals=2_000,
                                      bytes_accessed=44_000),
    )(scalars, v_cm, w_gvp, w_tail)

    scalars_out = packed_out[:, :OUT_SCALAR_DIM]
    vectors_out = packed_out[:, OUT_SCALAR_DIM:]         # (N, 3) == squeeze(1)
    return scalars_out, vectors_out


noise_prediction_block_jit = jax.jit(noise_prediction_block,
                                     static_argnames=("num_tiles",))


# ---- deterministic parameter init -------------------------------------------
def init_params(key):
    gvp_params = []
    keys = jax.random.split(key, 6 * N_GVPS + 2)
    ki = 0
    for i in range(N_GVPS):
        if i == N_GVPS - 1:
            v_out, f_out = 1, INTERMEDIATE_SCALAR_DIM
        else:
            v_out, f_out = VECTOR_SIZE, IN_SCALAR_DIM
        h = max(VECTOR_SIZE, v_out)
        wh = jax.random.normal(keys[ki], (VECTOR_SIZE, h), jnp.float32) / jnp.sqrt(VECTOR_SIZE); ki += 1
        wu = jax.random.normal(keys[ki], (h, v_out), jnp.float32) / jnp.sqrt(h); ki += 1
        wf = jax.random.normal(keys[ki], (IN_SCALAR_DIM + h, f_out), jnp.float32) / jnp.sqrt(IN_SCALAR_DIM + h); ki += 1
        bf = 0.01 * jax.random.normal(keys[ki], (1, f_out), jnp.float32); ki += 1
        wg = jax.random.normal(keys[ki], (f_out, v_out), jnp.float32) / jnp.sqrt(f_out); ki += 1
        bg = 0.01 * jax.random.normal(keys[ki], (1, v_out), jnp.float32); ki += 1
        gvp_params.append((wh, wu, wf, bf, wg, bg))
    wo = jax.random.normal(keys[ki], (INTERMEDIATE_SCALAR_DIM, OUT_SCALAR_DIM), jnp.float32) \
        / jnp.sqrt(INTERMEDIATE_SCALAR_DIM); ki += 1
    bo = 0.01 * jax.random.normal(keys[ki], (1, OUT_SCALAR_DIM), jnp.float32); ki += 1
    return gvp_params, wo, bo


# ---- pure-JAX reference (torch layout) --------------------------------------
def reference_forward(scalars, vectors, gvp_params, wo, bo):
    s, v = scalars, vectors                     # (N,F), (N,Vdim,3)
    for i, (wh, wu, wf, bf, wg, bg) in enumerate(gvp_params):
        vh = jnp.einsum('nvc,vh->nhc', v, wh)
        vu = jnp.einsum('nhc,hu->nuc', vh, wu)
        sh = jnp.sqrt(jnp.sum(vh * vh, axis=-1))
        feats = jnp.concatenate([s, sh], axis=-1) @ wf + bf[0]
        feats = feats * jax.nn.sigmoid(feats)   # SiLU
        gate = feats @ wg + bg[0]
        if i < len(gvp_params) - 1:
            gate = jax.nn.sigmoid(gate)
        v = gate[:, :, None] * vu
        s = feats
    s = s @ wo + bo[0]
    v = v[:, 0, :]                              # squeeze(1)
    return s, v


if __name__ == "__main__":
    key = jax.random.PRNGKey(0)
    k_s, k_v, k_p = jax.random.split(key, 3)

    scalars = jax.random.normal(k_s, (N_NODES, IN_SCALAR_DIM), jnp.float32)
    vectors = jax.random.normal(k_v, (N_NODES, VECTOR_SIZE, 3), jnp.float32)
    gvp_params, wo, bo = init_params(k_p)

    # One-time packing (init/load time), NOT in the per-call path.
    w_gvp, w_tail = pack_params(gvp_params, wo, bo)

    s_out, v_out = noise_prediction_block_jit(scalars, vectors, w_gvp, w_tail)
    s_out = jax.block_until_ready(s_out)
    v_out = jax.block_until_ready(v_out)

    s_ref, v_ref = reference_forward(scalars, vectors, gvp_params, wo, bo)

    assert s_out.shape == (N_NODES, OUT_SCALAR_DIM)
    assert v_out.shape == (N_NODES, 3)
    assert jnp.allclose(s_out, s_ref, atol=1e-4, rtol=1e-4)
    assert jnp.allclose(v_out, v_ref, atol=1e-4, rtol=1e-4)

    print("KERNEL_OK")
</pallas_src>

<mosaic_0001>
module attributes {stable_mosaic.version = 11 : i64} {
  func.func @_noise_pred_kernel(%arg0: i32, %arg1: memref<16x16xf32, #tpu.memory_space<vmem>>, %arg2: memref<3x16x4xf32, #tpu.memory_space<vmem>>, %arg3: memref<3x25x128xf32, #tpu.memory_space<vmem>>, %arg4: memref<65x9xf32, #tpu.memory_space<vmem>>, %arg5: memref<16x11xf32, #tpu.memory_space<vmem>>) attributes {dimension_semantics = [#tpu.dimension_semantics<arbitrary>], iteration_bounds = array<i64: 1>, scalar_prefetch = 0 : i64, scratch_operands = 0 : i64, tpu.core_type = #tpu.core_type<tc>, window_params = [{transform_indices = @transform_0, window_bounds = array<i64: 16, 16>}, {transform_indices = @transform_1, window_bounds = array<i64: 3, 16, 4>}, {pipeline_mode = #tpu.pipeline_mode<synchronous>, transform_indices = @transform_2, window_bounds = array<i64: 3, 25, 128>}, {pipeline_mode = #tpu.pipeline_mode<synchronous>, transform_indices = @transform_3, window_bounds = array<i64: 65, 9>}, {transform_indices = @transform_4, window_bounds = array<i64: 16, 11>}]} {
    %c0 = arith.constant 0 : index
    %c0_0 = arith.constant 0 : index
    %0 = vector.load %arg1[%c0, %c0_0] : memref<16x16xf32, #tpu.memory_space<vmem>>, vector<16x16xf32>
    %c0_1 = arith.constant 0 : index
    %c0_2 = arith.constant 0 : index
    %c0_3 = arith.constant 0 : index
    %1 = vector.load %arg2[%c0_1, %c0_2, %c0_3] : memref<3x16x4xf32, #tpu.memory_space<vmem>>, vector<3x16x4xf32>
    %2 = vector.shape_cast %1 : vector<3x16x4xf32> to vector<48x4xf32>
    %c0_4 = arith.constant 0 : index
    %c0_5 = arith.constant 0 : index
    %c0_6 = arith.constant 0 : index
    %3 = vector.load %arg3[%c0_4, %c0_5, %c0_6] : memref<3x25x128xf32, #tpu.memory_space<vmem>>, vector<1x16x20xf32>
    %4 = vector.shape_cast %3 : vector<1x16x20xf32> to vector<16x20xf32>
    %c0_7 = arith.constant 0 : index
    %c20 = arith.constant 20 : index
    %c0_8 = arith.constant 0 : index
    %5 = vector.load %arg3[%c0_7, %c20, %c0_8] : memref<3x25x128xf32, #tpu.memory_space<vmem>>, vector<1x1x20xf32>
    %6 = vector.shape_cast %5 : vector<1x1x20xf32> to vector<1x20xf32>
    %cst = arith.constant dense<0.000000e+00> : vector<16x20xf32>
    %7 = tpu.matmul %0, %4, %cst {dimension_numbers = #tpu.dot_dimension_numbers<[1], [0], [0], [1], [0, 0, 1, 1], [], []>} : vector<16x16xf32>, vector<16x20xf32>, vector<16x20xf32> -> vector<16x20xf32>
    %8 = vector.broadcast %6 : vector<1x20xf32> to vector<16x20xf32>
    %9 = arith.addf %7, %8 : vector<16x20xf32>
    %c0_9 = arith.constant 0 : index
    %c21 = arith.constant 21 : index
    %c0_10 = arith.constant 0 : index
    %10 = vector.load %arg3[%c0_9, %c21, %c0_10] : memref<3x25x128xf32, #tpu.memory_space<vmem>>, vector<1x4x8xf32>
    %11 = vector.shape_cast %10 : vector<1x4x8xf32> to vector<4x8xf32>
    %cst_11 = arith.constant dense<0.000000e+00> : vector<48x8xf32>
    %12 = tpu.matmul %2, %11, %cst_11 {dimension_numbers = #tpu.dot_dimension_numbers<[1], [0], [0], [1], [0, 0, 1, 1], [], []>} : vector<48x4xf32>, vector<4x8xf32>, vector<48x8xf32> -> vector<48x8xf32>
    %13 = vector.extract_strided_slice %12 {offsets = [0, 0], sizes = [48, 4], strides = [1, 1]} : vector<48x8xf32> to vector<48x4xf32>
    %14 = vector.extract_strided_slice %12 {offsets = [0, 4], sizes = [48, 4], strides = [1, 1]} : vector<48x8xf32> to vector<48x4xf32>
    %15 = vector.shape_cast %13 : vector<48x4xf32> to vector<3x16x4xf32>
    %16 = vector.extract_strided_slice %15 {offsets = [0, 0, 0], sizes = [1, 16, 4], strides = [1, 1, 1]} : vector<3x16x4xf32> to vector<1x16x4xf32>
    %17 = vector.shape_cast %16 : vector<1x16x4xf32> to vector<16x4xf32>
    %18 = vector.extract_strided_slice %15 {offsets = [0, 0, 0], sizes = [1, 16, 4], strides = [1, 1, 1]} : vector<3x16x4xf32> to vector<1x16x4xf32>
    %19 = vector.shape_cast %18 : vector<1x16x4xf32> to vector<16x4xf32>
    %20 = arith.mulf %17, %19 : vector<16x4xf32>
    %21 = vector.extract_strided_slice %15 {offsets = [1, 0, 0], sizes = [1, 16, 4], strides = [1, 1, 1]} : vector<3x16x4xf32> to vector<1x16x4xf32>
    %22 = vector.shape_cast %21 : vector<1x16x4xf32> to vector<16x4xf32>
    %23 = vector.extract_strided_slice %15 {offsets = [1, 0, 0], sizes = [1, 16, 4], strides = [1, 1, 1]} : vector<3x16x4xf32> to vector<1x16x4xf32>
    %24 = vector.shape_cast %23 : vector<1x16x4xf32> to vector<16x4xf32>
    %25 = arith.mulf %22, %24 : vector<16x4xf32>
    %26 = arith.addf %20, %25 : vector<16x4xf32>
    %27 = vector.extract_strided_slice %15 {offsets = [2, 0, 0], sizes = [1, 16, 4], strides = [1, 1, 1]} : vector<3x16x4xf32> to vector<1x16x4xf32>
    %28 = vector.shape_cast %27 : vector<1x16x4xf32> to vector<16x4xf32>
    %29 = vector.extract_strided_slice %15 {offsets = [2, 0, 0], sizes = [1, 16, 4], strides = [1, 1, 1]} : vector<3x16x4xf32> to vector<1x16x4xf32>
    %30 = vector.shape_cast %29 : vector<1x16x4xf32> to vector<16x4xf32>
    %31 = arith.mulf %28, %30 : vector<16x4xf32>
    %32 = arith.addf %26, %31 : vector<16x4xf32>
    %33 = math.sqrt %32 : vector<16x4xf32>
    %c0_12 = arith.constant 0 : index
    %c16 = arith.constant 16 : index
    %c0_13 = arith.constant 0 : index
    %34 = vector.load %arg3[%c0_12, %c16, %c0_13] : memref<3x25x128xf32, #tpu.memory_space<vmem>>, vector<1x4x16xf32>
    %35 = vector.shape_cast %34 : vector<1x4x16xf32> to vector<4x16xf32>
    %36 = vector.extract_strided_slice %9 {offsets = [0, 4], sizes = [16, 16], strides = [1, 1]} : vector<16x20xf32> to vector<16x16xf32>
    %cst_14 = arith.constant dense<0.000000e+00> : vector<16x16xf32>
    %37 = tpu.matmul %33, %35, %cst_14 {dimension_numbers = #tpu.dot_dimension_numbers<[1], [0], [0], [1], [0, 0, 1, 1], [], []>} : vector<16x4xf32>, vector<4x16xf32>, vector<16x16xf32> -> vector<16x16xf32>
    %38 = arith.addf %36, %37 : vector<16x16xf32>
    %39 = arith.negf %38 : vector<16x16xf32>
    %40 = math.exp %39 : vector<16x16xf32>
    %cst_15 = arith.constant 1.000000e+00 : f32
    %41 = vector.broadcast %cst_15 : f32 to vector<16x16xf32>
    %42 = arith.addf %41, %40 : vector<16x16xf32>
    %43 = arith.divf %41, %42 : vector<16x16xf32>
    %44 = arith.mulf %38, %43 : vector<16x16xf32>
    %c1 = arith.constant 1 : index
    %c0_16 = arith.constant 0 : index
    %c0_17 = arith.constant 0 : index
    %45 = vector.load %arg3[%c1, %c0_16, %c0_17] : memref<3x25x128xf32, #tpu.memory_space<vmem>>, vector<1x16x20xf32>
    %46 = vector.shape_cast %45 : vector<1x16x20xf32> to vector<16x20xf32>
    %c1_18 = arith.constant 1 : index
    %c20_19 = arith.constant 20 : index
    %c0_20 = arith.constant 0 : index
    %47 = vector.load %arg3[%c1_18, %c20_19, %c0_20] : memref<3x25x128xf32, #tpu.memory_space<vmem>>, vector<1x1x20xf32>
    %48 = vector.shape_cast %47 : vector<1x1x20xf32> to vector<1x20xf32>
    %cst_21 = arith.constant dense<0.000000e+00> : vector<16x20xf32>
    %49 = tpu.matmul %44, %46, %cst_21 {dimension_numbers = #tpu.dot_dimension_numbers<[1], [0], [0], [1], [0, 0, 1, 1], [], []>} : vector<16x16xf32>, vector<16x20xf32>, vector<16x20xf32> -> vector<16x20xf32>
    %50 = vector.broadcast %48 : vector<1x20xf32> to vector<16x20xf32>
    %51 = arith.addf %49, %50 : vector<16x20xf32>
    %52 = vector.extract_strided_slice %51 {offsets = [0, 0], sizes = [16, 4], strides = [1, 1]} : vector<16x20xf32> to vector<16x4xf32>
    %53 = arith.negf %52 : vector<16x4xf32>
    %54 = math.exp %53 : vector<16x4xf32>
    %cst_22 = arith.constant 1.000000e+00 : f32
    %55 = vector.broadcast %cst_22 : f32 to vector<16x4xf32>
    %56 = arith.addf %55, %54 : vector<16x4xf32>
    %57 = arith.divf %55, %56 : vector<16x4xf32>
    %58 = vector.shape_cast %14 : vector<48x4xf32> to vector<3x16x4xf32>
    %59 = vector.shape_cast %57 : vector<16x4xf32> to vector<1x16x4xf32>
    %60 = vector.broadcast %59 : vector<1x16x4xf32> to vector<3x16x4xf32>
    %61 = arith.mulf %58, %60 : vector<3x16x4xf32>
    %62 = vector.shape_cast %61 : vector<3x16x4xf32> to vector<48x4xf32>
    %c1_23 = arith.constant 1 : index
    %c21_24 = arith.constant 21 : index
    %c0_25 = arith.constant 0 : index
    %63 = vector.load %arg3[%c1_23, %c21_24, %c0_25] : memref<3x25x128xf32, #tpu.memory_space<vmem>>, vector<1x4x8xf32>
    %64 = vector.shape_cast %63 : vector<1x4x8xf32> to vector<4x8xf32>
    %cst_26 = arith.constant dense<0.000000e+00> : vector<48x8xf32>
    %65 = tpu.matmul %62, %64, %cst_26 {dimension_numbers = #tpu.dot_dimension_numbers<[1], [0], [0], [1], [0, 0, 1, 1], [], []>} : vector<48x4xf32>, vector<4x8xf32>, vector<48x8xf32> -> vector<48x8xf32>
    %66 = vector.extract_strided_slice %65 {offsets = [0, 0], sizes = [48, 4], strides = [1, 1]} : vector<48x8xf32> to vector<48x4xf32>
    %67 = vector.extract_strided_slice %65 {offsets = [0, 4], sizes = [48, 4], strides = [1, 1]} : vector<48x8xf32> to vector<48x4xf32>
    %68 = vector.shape_cast %66 : vector<48x4xf32> to vector<3x16x4xf32>
    %69 = vector.extract_strided_slice %68 {offsets = [0, 0, 0], sizes = [1, 16, 4], strides = [1, 1, 1]} : vector<3x16x4xf32> to vector<1x16x4xf32>
    %70 = vector.shape_cast %69 : vector<1x16x4xf32> to vector<16x4xf32>
    %71 = vector.extract_strided_slice %68 {offsets = [0, 0, 0], sizes = [1, 16, 4], strides = [1, 1, 1]} : vector<3x16x4xf32> to vector<1x16x4xf32>
    %72 = vector.shape_cast %71 : vector<1x16x4xf32> to vector<16x4xf32>
    %73 = arith.mulf %70, %72 : vector<16x4xf32>
    %74 = vector.extract_strided_slice %68 {offsets = [1, 0, 0], sizes = [1, 16, 4], strides = [1, 1, 1]} : vector<3x16x4xf32> to vector<1x16x4xf32>
    %75 = vector.shape_cast %74 : vector<1x16x4xf32> to vector<16x4xf32>
    %76 = vector.extract_strided_slice %68 {offsets = [1, 0, 0], sizes = [1, 16, 4], strides = [1, 1, 1]} : vector<3x16x4xf32> to vector<1x16x4xf32>
    %77 = vector.shape_cast %76 : vector<1x16x4xf32> to vector<16x4xf32>
    %78 = arith.mulf %75, %77 : vector<16x4xf32>
    %79 = arith.addf %73, %78 : vector<16x4xf32>
    %80 = vector.extract_strided_slice %68 {offsets = [2, 0, 0], sizes = [1, 16, 4], strides = [1, 1, 1]} : vector<3x16x4xf32> to vector<1x16x4xf32>
    %81 = vector.shape_cast %80 : vector<1x16x4xf32> to vector<16x4xf32>
    %82 = vector.extract_strided_slice %68 {offsets = [2, 0, 0], sizes = [1, 16, 4], strides = [1, 1, 1]} : vector<3x16x4xf32> to vector<1x16x4xf32>
    %83 = vector.shape_cast %82 : vector<1x16x4xf32> to vector<16x4xf32>
    %84 = arith.mulf %81, %83 : vector<16x4xf32>
    %85 = arith.addf %79, %84 : vector<16x4xf32>
    %86 = math.sqrt %85 : vector<16x4xf32>
    %c1_27 = arith.constant 1 : index
    %c16_28 = arith.constant 16 : index
    %c0_29 = arith.constant 0 : index
    %87 = vector.load %arg3[%c1_27, %c16_28, %c0_29] : memref<3x25x128xf32, #tpu.memory_space<vmem>>, vector<1x4x16xf32>
    %88 = vector.shape_cast %87 : vector<1x4x16xf32> to vector<4x16xf32>
    %89 = vector.extract_strided_slice %51 {offsets = [0, 4], sizes = [16, 16], strides = [1, 1]} : vector<16x20xf32> to vector<16x16xf32>
    %cst_30 = arith.constant dense<0.000000e+00> : vector<16x16xf32>
    %90 = tpu.matmul %86, %88, %cst_30 {dimension_numbers = #tpu.dot_dimension_numbers<[1], [0], [0], [1], [0, 0, 1, 1], [], []>} : vector<16x4xf32>, vector<4x16xf32>, vector<16x16xf32> -> vector<16x16xf32>
    %91 = arith.addf %89, %90 : vector<16x16xf32>
    %92 = arith.negf %91 : vector<16x16xf32>
    %93 = math.exp %92 : vector<16x16xf32>
    %cst_31 = arith.constant 1.000000e+00 : f32
    %94 = vector.broadcast %cst_31 : f32 to vector<16x16xf32>
    %95 = arith.addf %94, %93 : vector<16x16xf32>
    %96 = arith.divf %94, %95 : vector<16x16xf32>
    %97 = arith.mulf %91, %96 : vector<16x16xf32>
    %c2 = arith.constant 2 : index
    %c0_32 = arith.constant 0 : index
    %c0_33 = arith.constant 0 : index
    %98 = vector.load %arg3[%c2, %c0_32, %c0_33] : memref<3x25x128xf32, #tpu.memory_space<vmem>>, vector<1x16x68xf32>
    %99 = vector.shape_cast %98 : vector<1x16x68xf32> to vector<16x68xf32>
    %c2_34 = arith.constant 2 : index
    %c20_35 = arith.constant 20 : index
    %c0_36 = arith.constant 0 : index
    %100 = vector.load %arg3[%c2_34, %c20_35, %c0_36] : memref<3x25x128xf32, #tpu.memory_space<vmem>>, vector<1x1x68xf32>
    %101 = vector.shape_cast %100 : vector<1x1x68xf32> to vector<1x68xf32>
    %cst_37 = arith.constant dense<0.000000e+00> : vector<16x68xf32>
    %102 = tpu.matmul %97, %99, %cst_37 {dimension_numbers = #tpu.dot_dimension_numbers<[1], [0], [0], [1], [0, 0, 1, 1], [], []>} : vector<16x16xf32>, vector<16x68xf32>, vector<16x68xf32> -> vector<16x68xf32>
    %103 = vector.broadcast %101 : vector<1x68xf32> to vector<16x68xf32>
    %104 = arith.addf %102, %103 : vector<16x68xf32>
    %105 = vector.extract_strided_slice %104 {offsets = [0, 0], sizes = [16, 4], strides = [1, 1]} : vector<16x68xf32> to vector<16x4xf32>
    %106 = arith.negf %105 : vector<16x4xf32>
    %107 = math.exp %106 : vector<16x4xf32>
    %cst_38 = arith.constant 1.000000e+00 : f32
    %108 = vector.broadcast %cst_38 : f32 to vector<16x4xf32>
    %109 = arith.addf %108, %107 : vector<16x4xf32>
    %110 = arith.divf %108, %109 : vector<16x4xf32>
    %111 = vector.shape_cast %67 : vector<48x4xf32> to vector<3x16x4xf32>
    %112 = vector.shape_cast %110 : vector<16x4xf32> to vector<1x16x4xf32>
    %113 = vector.broadcast %112 : vector<1x16x4xf32> to vector<3x16x4xf32>
    %114 = arith.mulf %111, %113 : vector<3x16x4xf32>
    %115 = vector.shape_cast %114 : vector<3x16x4xf32> to vector<48x4xf32>
    %c2_39 = arith.constant 2 : index
    %c21_40 = arith.constant 21 : index
    %c0_41 = arith.constant 0 : index
    %116 = vector.load %arg3[%c2_39, %c21_40, %c0_41] : memref<3x25x128xf32, #tpu.memory_space<vmem>>, vector<1x4x5xf32>
    %117 = vector.shape_cast %116 : vector<1x4x5xf32> to vector<4x5xf32>
    %cst_42 = arith.constant dense<0.000000e+00> : vector<48x5xf32>
    %118 = tpu.matmul %115, %117, %cst_42 {dimension_numbers = #tpu.dot_dimension_numbers<[1], [0], [0], [1], [0, 0, 1, 1], [], []>} : vector<48x4xf32>, vector<4x5xf32>, vector<48x5xf32> -> vector<48x5xf32>
    %119 = vector.extract_strided_slice %118 {offsets = [0, 0], sizes = [48, 4], strides = [1, 1]} : vector<48x5xf32> to vector<48x4xf32>
    %120 = vector.extract_strided_slice %118 {offsets = [0, 4], sizes = [48, 1], strides = [1, 1]} : vector<48x5xf32> to vector<48x1xf32>
    %121 = vector.shape_cast %119 : vector<48x4xf32> to vector<3x16x4xf32>
    %122 = vector.extract_strided_slice %121 {offsets = [0, 0, 0], sizes = [1, 16, 4], strides = [1, 1, 1]} : vector<3x16x4xf32> to vector<1x16x4xf32>
    %123 = vector.shape_cast %122 : vector<1x16x4xf32> to vector<16x4xf32>
    %124 = vector.extract_strided_slice %121 {offsets = [0, 0, 0], sizes = [1, 16, 4], strides = [1, 1, 1]} : vector<3x16x4xf32> to vector<1x16x4xf32>
    %125 = vector.shape_cast %124 : vector<1x16x4xf32> to vector<16x4xf32>
    %126 = arith.mulf %123, %125 : vector<16x4xf32>
    %127 = vector.extract_strided_slice %121 {offsets = [1, 0, 0], sizes = [1, 16, 4], strides = [1, 1, 1]} : vector<3x16x4xf32> to vector<1x16x4xf32>
    %128 = vector.shape_cast %127 : vector<1x16x4xf32> to vector<16x4xf32>
    %129 = vector.extract_strided_slice %121 {offsets = [1, 0, 0], sizes = [1, 16, 4], strides = [1, 1, 1]} : vector<3x16x4xf32> to vector<1x16x4xf32>
    %130 = vector.shape_cast %129 : vector<1x16x4xf32> to vector<16x4xf32>
    %131 = arith.mulf %128, %130 : vector<16x4xf32>
    %132 = arith.addf %126, %131 : vector<16x4xf32>
    %133 = vector.extract_strided_slice %121 {offsets = [2, 0, 0], sizes = [1, 16, 4], strides = [1, 1, 1]} : vector<3x16x4xf32> to vector<1x16x4xf32>
    %134 = vector.shape_cast %133 : vector<1x16x4xf32> to vector<16x4xf32>
    %135 = vector.extract_strided_slice %121 {offsets = [2, 0, 0], sizes = [1, 16, 4], strides = [1, 1, 1]} : vector<3x16x4xf32> to vector<1x16x4xf32>
    %136 = vector.shape_cast %135 : vector<1x16x4xf32> to vector<16x4xf32>
    %137 = arith.mulf %134, %136 : vector<16x4xf32>
    %138 = arith.addf %132, %137 : vector<16x4xf32>
    %139 = math.sqrt %138 : vector<16x4xf32>
    %c2_43 = arith.constant 2 : index
    %c16_44 = arith.constant 16 : index
    %c0_45 = arith.constant 0 : index
    %140 = vector.load %arg3[%c2_43, %c16_44, %c0_45] : memref<3x25x128xf32, #tpu.memory_space<vmem>>, vector<1x4x64xf32>
    %141 = vector.shape_cast %140 : vector<1x4x64xf32> to vector<4x64xf32>
    %142 = vector.extract_strided_slice %104 {offsets = [0, 4], sizes = [16, 64], strides = [1, 1]} : vector<16x68xf32> to vector<16x64xf32>
    %cst_46 = arith.constant dense<0.000000e+00> : vector<16x64xf32>
    %143 = tpu.matmul %139, %141, %cst_46 {dimension_numbers = #tpu.dot_dimension_numbers<[1], [0], [0], [1], [0, 0, 1, 1], [], []>} : vector<16x4xf32>, vector<4x64xf32>, vector<16x64xf32> -> vector<16x64xf32>
    %144 = arith.addf %142, %143 : vector<16x64xf32>
    %145 = arith.negf %144 : vector<16x64xf32>
    %146 = math.exp %145 : vector<16x64xf32>
    %cst_47 = arith.constant 1.000000e+00 : f32
    %147 = vector.broadcast %cst_47 : f32 to vector<16x64xf32>
    %148 = arith.addf %147, %146 : vector<16x64xf32>
    %149 = arith.divf %147, %148 : vector<16x64xf32>
    %150 = arith.mulf %144, %149 : vector<16x64xf32>
    %c0_48 = arith.constant 0 : index
    %c0_49 = arith.constant 0 : index
    %151 = vector.load %arg4[%c0_48, %c0_49] : memref<65x9xf32, #tpu.memory_space<vmem>>, vector<64x9xf32>
    %cst_50 = arith.constant dense<0.000000e+00> : vector<16x9xf32>
    %152 = tpu.matmul %150, %151, %cst_50 {dimension_numbers = #tpu.dot_dimension_numbers<[1], [0], [0], [1], [0, 0, 1, 1], [], []>} : vector<16x64xf32>, vector<64x9xf32>, vector<16x9xf32> -> vector<16x9xf32>
    %c64 = arith.constant 64 : index
    %c0_51 = arith.constant 0 : index
    %153 = vector.load %arg4[%c64, %c0_51] : memref<65x9xf32, #tpu.memory_space<vmem>>, vector<1x9xf32>
    %154 = vector.broadcast %153 : vector<1x9xf32> to vector<16x9xf32>
    %155 = arith.addf %152, %154 : vector<16x9xf32>
    %156 = vector.extract_strided_slice %155 {offsets = [0, 8], sizes = [16, 1], strides = [1, 1]} : vector<16x9xf32> to vector<16x1xf32>
    %157 = vector.shape_cast %120 : vector<48x1xf32> to vector<3x16x1xf32>
    %158 = vector.shape_cast %156 : vector<16x1xf32> to vector<1x16x1xf32>
    %159 = vector.broadcast %158 : vector<1x16x1xf32> to vector<3x16x1xf32>
    %160 = arith.mulf %157, %159 : vector<3x16x1xf32>
    %161 = vector.extract_strided_slice %155 {offsets = [0, 0], sizes = [16, 8], strides = [1, 1]} : vector<16x9xf32> to vector<16x8xf32>
    %162 = vector.extract_strided_slice %160 {offsets = [0, 0, 0], sizes = [1, 16, 1], strides = [1, 1, 1]} : vector<3x16x1xf32> to vector<1x16x1xf32>
    %163 = vector.shape_cast %162 : vector<1x16x1xf32> to vector<16x1xf32>
    %164 = vector.extract_strided_slice %160 {offsets = [1, 0, 0], sizes = [1, 16, 1], strides = [1, 1, 1]} : vector<3x16x1xf32> to vector<1x16x1xf32>
    %165 = vector.shape_cast %164 : vector<1x16x1xf32> to vector<16x1xf32>
    %166 = vector.extract_strided_slice %160 {offsets = [2, 0, 0], sizes = [1, 16, 1], strides = [1, 1, 1]} : vector<3x16x1xf32> to vector<1x16x1xf32>
    %167 = vector.shape_cast %166 : vector<1x16x1xf32> to vector<16x1xf32>
    %168 = tpu.concatenate %161, %163, %165, %167 in 1 : vector<16x8xf32>, vector<16x1xf32>, vector<16x1xf32>, vector<16x1xf32> -> vector<16x11xf32>
    %c0_52 = arith.constant 0 : index
    %c0_53 = arith.constant 0 : index
    %169 = vector.load %arg5[%c0_52, %c0_53] : memref<16x11xf32, #tpu.memory_space<vmem>>, vector<16x11xf32>
    tpu.vector_store %arg5[%c0_52, %c0_53], %168 {strides = array<i32>} : memref<16x11xf32, #tpu.memory_space<vmem>>, vector<16x11xf32>,
    return
  }
  func.func @transform_0(%arg0: i32) -> (i32, i32) {
    %c0_i32 = arith.constant 0 : i32
    %c0_i32_0 = arith.constant 0 : i32
    return %arg0, %c0_i32 : i32, i32
  }
  func.func @transform_1(%arg0: i32) -> (i32, i32, i32) {
    %c0_i32 = arith.constant 0 : i32
    %c0_i32_0 = arith.constant 0 : i32
    %c0_i32_1 = arith.constant 0 : i32
    return %c0_i32, %arg0, %c0_i32_0 : i32, i32, i32
  }
  func.func @transform_2(%arg0: i32) -> (i32, i32, i32) {
    %c0_i32 = arith.constant 0 : i32
    %c0_i32_0 = arith.constant 0 : i32
    %c0_i32_1 = arith.constant 0 : i32
    %c0_i32_2 = arith.constant 0 : i32
    return %c0_i32, %c0_i32_0, %c0_i32_1 : i32, i32, i32
  }
  func.func @transform_3(%arg0: i32) -> (i32, i32) {
    %c0_i32 = arith.constant 0 : i32
    %c0_i32_0 = arith.constant 0 : i32
    %c0_i32_1 = arith.constant 0 : i32
    return %c0_i32, %c0_i32_0 : i32, i32
  }
  func.func @transform_4(%arg0: i32) -> (i32, i32) {
    %c0_i32 = arith.constant 0 : i32
    %c0_i32_0 = arith.constant 0 : i32
    return %arg0, %c0_i32 : i32, i32
  }
}

</mosaic_0001>

<llo_original>
// kernel: noise_prediction_block.1
$region0: #{noise_prediction_block.1}
  #allocation0 [shape = 'u32[]', space=smem, size = 0x4, offset = 0x4, fixed_abs, tag = 'smem constant byte address 0x4 - core index']
  #allocation1 [shape = 'u32[144,128]{1,0:T(1,128)}', space=vmem, size = 0x12000, scoped, tag = 'internal scratch']
  %s0 = inlined_call_operand.vmem [shape: f32[16,16], index: 0, kind: input, shape index: {}]
  %s1 = inlined_call_operand.vmem [shape: f32[3,16,4], index: 1, kind: input, shape index: {}]
  %s2 = inlined_call_operand.vmem [shape: f32[3,25,128], index: 2, kind: input, shape index: {}]
  %s3 = inlined_call_operand.vmem [shape: f32[65,9], index: 3, kind: input, shape index: {}]
  %s4 = inlined_call_operand.vmem [shape: f32[16,11], index: 4, kind: output, shape index: {}]
  %s5 = sld [smem:[#allocation0]]
  $region26: #{noise_prediction_block.1} parent=0
    _
  %s7 = ssub.s32 1, %s5
  %s8 = scalar_select 0, %s7, %s5
  // Predicated region
  $region2: #{noise_prediction_block.1} parent=0 // pred_check
    _
  $region3: #{noise_prediction_block.1} parent=0 // pred_check_branch
    %10 = sbr.rel (0) target = $region5
  $region4: #{noise_prediction_block.1} parent=0 // pred_region
    _
  $region5: #{noise_prediction_block.1} parent=0 // pred_fallthru
    _
  // Predicated region
  $region6: #{noise_prediction_block.1} parent=0 // pred_check
    _
  $region7: #{noise_prediction_block.1} parent=0 // pred_check_branch
    %12 = sbr.rel (0) target = $region9
  $region8: #{noise_prediction_block.1} parent=0 // pred_region
    _
  $region9: #{noise_prediction_block.1} parent=0 // pred_fallthru
    _
  // Predicated region
  $region10: #{noise_prediction_block.1} parent=0 // pred_check
    _
  $region11: #{noise_prediction_block.1} parent=0 // pred_check_branch
    %14 = sbr.rel (0) target = $region13
  $region12: #{noise_prediction_block.1} parent=0 // pred_region
    _
  $region13: #{noise_prediction_block.1} parent=0 // pred_fallthru
    _
  // Predicated region
  $region14: #{noise_prediction_block.1} parent=0 // pred_check
    _
  $region15: #{noise_prediction_block.1} parent=0 // pred_check_branch
    %16 = sbr.rel (0) target = $region17
  $region16: #{noise_prediction_block.1} parent=0 // pred_region
    _
  $region17: #{noise_prediction_block.1} parent=0 // pred_fallthru
    _
  %v17 = vld [vmem:[%s0] sm:$0xff]
  %v18 = vld [vmem:[%s0 + $0x8] sm:$0xff]
  %v19 = vld [vmem:[%s1] sm:$0xff]
  %v20 = vld [vmem:[%s1 + $0x8] sm:$0xff]
  %v21 = vld [vmem:[%s1 + $0x10] sm:$0xff]
  %v22 = vld [vmem:[%s1 + $0x18] sm:$0xff]
  %v23 = vld [vmem:[%s1 + $0x20] sm:$0xff]
  %v24 = vld [vmem:[%s1 + $0x28] sm:$0xff]
  %v25 = vld [vmem:[%s2] sm:$0xff]
  %v26 = vld [vmem:[%s2 + $0x8] sm:$0xff]
  %v27 = vld [vmem:[%s2 + $0x14] sm:$0x1]
  %v28 = vlaneseq
  %v29 = vshrl.u32 %v28, 7
  %v30 = vsub.s32 0, %v29
  %v31 = vrot.slane %v27, %v30
  %vm32 = vcmask 130048
  %v34 = vsel %vm32, %v17, 0
  %v37 = vsel %vm32, %v18, 0
  %39 = vmatprep.subr.mxu0 0.0
  %40 = vmatpush1.msra.mxu0 %v25
  %41 = vmatprep.subr.mxu0 0.0
  %42 = vmatpush1.msra.mxu0 %v26
  %43 = vmatprep.subr.mxu0 0.0
  %44 = vmatpush1.msra.mxu0 0.0
  %45 = vmatprep.subr.mxu0 0.0
  %46 = vmatpush1.msra.mxu0 0.0
  %47 = vmatprep.subr.mxu0 0.0
  %48 = vmatpush1.msra.mxu0 0.0
  %49 = vmatprep.subr.mxu0 0.0
  %50 = vmatpush1.msra.mxu0 0.0
  %51 = vmatprep.subr.mxu0 0.0
  %52 = vmatpush1.msra.mxu0 0.0
  %53 = vmatprep.subr.mxu0 0.0
  %54 = vmatpush1.msra.mxu0 0.0
  %55 = vmatprep.subr.mxu0 0.0
  %56 = vmatpush1.msra.mxu0 0.0
  %57 = vmatprep.subr.mxu0 0.0
  %58 = vmatpush1.msra.mxu0 0.0
  %59 = vmatprep.subr.mxu0 0.0
  %60 = vmatpush1.msra.mxu0 0.0
  %61 = vmatprep.subr.mxu0 0.0
  %62 = vmatpush1.msra.mxu0 0.0
  %63 = vmatprep.subr.mxu0 0.0
  %64 = vmatpush1.msra.mxu0 0.0
  %65 = vmatprep.subr.mxu0 0.0
  %66 = vmatpush1.msra.mxu0 0.0
  %67 = vmatprep.subr.mxu0 0.0
  %68 = vmatpush1.msra.mxu0 0.0
  %69 = vmatprep.subr.mxu0 0.0
  %70 = vmatpush1.msra.mxu0 0.0
  %71 = vmatprep.subr.mxu0 0.0
  %72 = vmatpush1.msra.mxu0 0.0
  %73 = vmatprep.subr.mxu0 0.0
  %74 = vmatpush1.msra.mxu0 0.0
  %75 = vmatprep.subr.mxu0 0.0
  %76 = vmatpush1.msra.mxu0 0.0
  %77 = vmatprep.subr.mxu0 0.0
  %78 = vmatpush1.msra.mxu0 0.0
  %79 = vmatprep.subr.mxu0 0.0
  %80 = vmatpush1.msra.mxu0 0.0
  %81 = vmatprep.subr.mxu0 0.0
  %82 = vmatpush1.msra.mxu0 0.0
  %83 = vmatprep.subr.mxu0 0.0
  %84 = vmatpush1.msra.mxu0 0.0
  %85 = vmatprep.subr.mxu0 0.0
  %86 = vmatpush1.msra.mxu0 0.0
  %87 = vmatprep.subr.mxu0 0.0
  %88 = vmatpush1.msra.mxu0 0.0
  %89 = vmatprep.subr.mxu0 0.0
  %90 = vmatpush1.msra.mxu0 0.0
  %91 = vmatprep.subr.mxu0 0.0
  %92 = vmatpush1.msra.mxu0 0.0
  %93 = vmatprep.subr.mxu0 0.0
  %94 = vmatpush1.msra.mxu0 0.0
  %95 = vmatprep.subr.mxu0 0.0
  %96 = vmatpush1.msra.mxu0 0.0
  %97 = vmatprep.subr.mxu0 0.0
  %98 = vmatpush1.msra.mxu0 0.0
  %99 = vmatprep.subr.mxu0 0.0
  %100 = vmatpush1.msra.mxu0 0.0
  %101 = vmatprep.subr.mxu0 0.0
  %102 = vmatpush1.msra.mxu0 0.0
  %103 = vmatprep.mubr.f32.mxu0 0.0
  %104 = vmatmul.mubr.f32.gmra.mrb[0].mxu0 %v34
  %v105 = vpop.f32.mrb[0].mxu0
  %v106 = vadd.f32 %v31, %v105
  %v107 = vpop.f32.mrb[0].mxu0
  %108 = vmatprep.mubr.f32.mxu0 0.0
  %109 = vmatmul.mubr.f32.gmra.mrb[0].mxu0 %v37
  %v110 = vpop.f32.mrb[0].mxu0
  %v111 = vadd.f32 %v31, %v110
  %v112 = vpop.f32.mrb[0].mxu0
  %113 = vdwg.mxu0
  %v114 = vld [vmem:[%s2 + $0x15] sm:$0xf]
  %vm115 = vcmask 31744
  %v117 = vsel %vm115, %v19, 0
  %v120 = vsel %vm115, %v20, 0
  %v123 = vsel %vm115, %v21, 0
  %v126 = vsel %vm115, %v22, 0
  %v129 = vsel %vm115, %v23, 0
  %v132 = vsel %vm115, %v24, 0
  %vm134 = vcmask 1043456
  %v136 = vsel %vm134, %v114, 0
  %138 = vmatprep.subr.mxu0 0.0
  %139 = vmatpush1.msra.mxu0 %v136
  %140 = vmatprep.subr.mxu0 0.0
  %141 = vmatpush1.msra.mxu0 0.0
  %142 = vmatprep.subr.mxu0 0.0
  %143 = vmatpush1.msra.mxu0 0.0
  %144 = vmatprep.subr.mxu0 0.0
  %145 = vmatpush1.msra.mxu0 0.0
  %146 = vmatprep.subr.mxu0 0.0
  %147 = vmatpush1.msra.mxu0 0.0
  %148 = vmatprep.subr.mxu0 0.0
  %149 = vmatpush1.msra.mxu0 0.0
  %150 = vmatprep.subr.mxu0 0.0
  %151 = vmatpush1.msra.mxu0 0.0
  %152 = vmatprep.subr.mxu0 0.0
  %153 = vmatpush1.msra.mxu0 0.0
  %154 = vmatprep.subr.mxu0 0.0
  %155 = vmatpush1.msra.mxu0 0.0
  %156 = vmatprep.subr.mxu0 0.0
  %157 = vmatpush1.msra.mxu0 0.0
  %158 = vmatprep.subr.mxu0 0.0
  %159 = vmatpush1.msra.mxu0 0.0
  %160 = vmatprep.subr.mxu0 0.0
  %161 = vmatpush1.msra.mxu0 0.0
  %162 = vmatprep.subr.mxu0 0.0
  %163 = vmatpush1.msra.mxu0 0.0
  %164 = vmatprep.subr.mxu0 0.0
  %165 = vmatpush1.msra.mxu0 0.0
  %166 = vmatprep.subr.mxu0 0.0
  %167 = vmatpush1.msra.mxu0 0.0
  %168 = vmatprep.subr.mxu0 0.0
  %169 = vmatpush1.msra.mxu0 0.0
  %170 = vmatprep.subr.mxu0 0.0
  %171 = vmatpush1.msra.mxu0 0.0
  %172 = vmatprep.subr.mxu0 0.0
  %173 = vmatpush1.msra.mxu0 0.0
  %174 = vmatprep.subr.mxu0 0.0
  %175 = vmatpush1.msra.mxu0 0.0
  %176 = vmatprep.subr.mxu0 0.0
  %177 = vmatpush1.msra.mxu0 0.0
  %178 = vmatprep.subr.mxu0 0.0
  %179 = vmatpush1.msra.mxu0 0.0
  %180 = vmatprep.subr.mxu0 0.0
  %181 = vmatpush1.msra.mxu0 0.0
  %182 = vmatprep.subr.mxu0 0.0
  %183 = vmatpush1.msra.mxu0 0.0
  %184 = vmatprep.subr.mxu0 0.0
  %185 = vmatpush1.msra.mxu0 0.0
  %186 = vmatprep.subr.mxu0 0.0
  %187 = vmatpush1.msra.mxu0 0.0
  %188 = vmatprep.subr.mxu0 0.0
  %189 = vmatpush1.msra.mxu0 0.0
  %190 = vmatprep.subr.mxu0 0.0
  %191 = vmatpush1.msra.mxu0 0.0
  %192 = vmatprep.subr.mxu0 0.0
  %193 = vmatpush1.msra.mxu0 0.0
  %194 = vmatprep.subr.mxu0 0.0
  %195 = vmatpush1.msra.mxu0 0.0
  %196 = vmatprep.subr.mxu0 0.0
  %197 = vmatpush1.msra.mxu0 0.0
  %198 = vmatprep.subr.mxu0 0.0
  %199 = vmatpush1.msra.mxu0 0.0
  %200 = vmatprep.subr.mxu0 0.0
  %201 = vmatpush1.msra.mxu0 0.0
  %202 = vmatprep.mubr.f32.mxu0 0.0
  %203 = vmatmul.mubr.f32.gmra.mrb[0].mxu0 %v117
  %v204 = vpop.f32.mrb[0].mxu0
  %v205 = vadd.f32 0.0, %v204
  %v206 = vpop.f32.mrb[0].mxu0
  %207 = vmatprep.mubr.f32.mxu0 0.0
  %208 = vmatmul.mubr.f32.gmra.mrb[0].mxu0 %v120
  %v209 = vpop.f32.mrb[0].mxu0
  %v210 = vadd.f32 0.0, %v209
  %v211 = vpop.f32.mrb[0].mxu0
  %212 = vmatprep.mubr.f32.mxu0 0.0
  %213 = vmatmul.mubr.f32.gmra.mrb[0].mxu0 %v123
  %v214 = vpop.f32.mrb[0].mxu0
  %v215 = vadd.f32 0.0, %v214
  %v216 = vpop.f32.mrb[0].mxu0
  %217 = vmatprep.mubr.f32.mxu0 0.0
  %218 = vmatmul.mubr.f32.gmra.mrb[0].mxu0 %v126
  %v219 = vpop.f32.mrb[0].mxu0
  %v220 = vadd.f32 0.0, %v219
  %v221 = vpop.f32.mrb[0].mxu0
  %222 = vmatprep.mubr.f32.mxu0 0.0
  %223 = vmatmul.mubr.f32.gmra.mrb[0].mxu0 %v129
  %v224 = vpop.f32.mrb[0].mxu0
  %v225 = vadd.f32 0.0, %v224
  %v226 = vpop.f32.mrb[0].mxu0
  %227 = vmatprep.mubr.f32.mxu0 0.0
  %228 = vmatmul.mubr.f32.gmra.mrb[0].mxu0 %v132
  %v229 = vpop.f32.mrb[0].mxu0
  %v230 = vadd.f32 0.0, %v229
  %v231 = vpop.f32.mrb[0].mxu0
  %232 = vdwg.mxu0
  %v233 = vmul.f32 %v205, %v205
  %v234 = vmul.f32 %v210, %v210
  %v235 = vmul.f32 %v215, %v215
  %v236 = vmul.f32 %v220, %v220
  %v237 = vadd.f32 %v233, %v235
  %v238 = vadd.f32 %v234, %v236
  %v239 = vmul.f32 %v225, %v225
  %v240 = vmul.f32 %v230, %v230
  %v241 = vadd.f32 %v237, %v239
  %v242 = vadd.f32 %v238, %v240
  %v243 = vrsqrt.pop %v241
  %v244 = vmul.f32 %v241, %v243
  %vm245 = vcmp.eq.f32.partialorder %v241, inf
  %v246 = vsel %vm245, %v241, %v244
  %vm247 = vcmp.eq.f32.partialorder %v241, 0.0
  %v248 = vand.u32 %v241, 2147483648
  %v249 = vsel %vm247, %v248, %v246
  %v250 = vrsqrt.pop %v242
  %v251 = vmul.f32 %v242, %v250
  %vm252 = vcmp.eq.f32.partialorder %v242, inf
  %v253 = vsel %vm252, %v242, %v251
  %vm254 = vcmp.eq.f32.partialorder %v242, 0.0
  %v255 = vand.u32 %v242, 2147483648
  %v256 = vsel %vm254, %v255, %v253
  %v257 = vld [vmem:[%s2 + $0x10] sm:$0xf]
  %v259 = vsel %vm115, %v249, 0
  %v262 = vsel %vm115, %v256, 0
  %v265 = vsel %vm134, %v257, 0
  %267 = vmatprep.subr.mxu0 0.0
  %268 = vmatpush1.msra.mxu0 %v265
  %269 = vmatprep.subr.mxu0 0.0
  %270 = vmatpush1.msra.mxu0 0.0
  %271 = vmatprep.subr.mxu0 0.0
  %272 = vmatpush1.msra.mxu0 0.0
  %273 = vmatprep.subr.mxu0 0.0
  %274 = vmatpush1.msra.mxu0 0.0
  %275 = vmatprep.subr.mxu0 0.0
  %276 = vmatpush1.msra.mxu0 0.0
  %277 = vmatprep.subr.mxu0 0.0
  %278 = vmatpush1.msra.mxu0 0.0
  %279 = vmatprep.subr.mxu0 0.0
  %280 = vmatpush1.msra.mxu0 0.0
  %281 = vmatprep.subr.mxu0 0.0
  %282 = vmatpush1.msra.mxu0 0.0
  %283 = vmatprep.subr.mxu0 0.0
  %284 = vmatpush1.msra.mxu0 0.0
  %285 = vmatprep.subr.mxu0 0.0
  %286 = vmatpush1.msra.mxu0 0.0
  %287 = vmatprep.subr.mxu0 0.0
  %288 = vmatpush1.msra.mxu0 0.0
  %289 = vmatprep.subr.mxu0 0.0
  %290 = vmatpush1.msra.mxu0 0.0
  %291 = vmatprep.subr.mxu0 0.0
  %292 = vmatpush1.msra.mxu0 0.0
  %293 = vmatprep.subr.mxu0 0.0
  %294 = vmatpush1.msra.mxu0 0.0
  %295 = vmatprep.subr.mxu0 0.0
  %296 = vmatpush1.msra.mxu0 0.0
  %297 = vmatprep.subr.mxu0 0.0
  %298 = vmatpush1.msra.mxu0 0.0
  %299 = vmatprep.subr.mxu0 0.0
  %300 = vmatpush1.msra.mxu0 0.0
  %301 = vmatprep.subr.mxu0 0.0
  %302 = vmatpush1.msra.mxu0 0.0
  %303 = vmatprep.subr.mxu0 0.0
  %304 = vmatpush1.msra.mxu0 0.0
  %305 = vmatprep.subr.mxu0 0.0
  %306 = vmatpush1.msra.mxu0 0.0
  %307 = vmatprep.subr.mxu0 0.0
  %308 = vmatpush1.msra.mxu0 0.0
  %309 = vmatprep.subr.mxu0 0.0
  %310 = vmatpush1.msra.mxu0 0.0
  %311 = vmatprep.subr.mxu0 0.0
  %312 = vmatpush1.msra.mxu0 0.0
  %313 = vmatprep.subr.mxu0 0.0
  %314 = vmatpush1.msra.mxu0 0.0
  %315 = vmatprep.subr.mxu0 0.0
  %316 = vmatpush1.msra.mxu0 0.0
  %317 = vmatprep.subr.mxu0 0.0
  %318 = vmatpush1.msra.mxu0 0.0
  %319 = vmatprep.subr.mxu0 0.0
  %320 = vmatpush1.msra.mxu0 0.0
  %321 = vmatprep.subr.mxu0 0.0
  %322 = vmatpush1.msra.mxu0 0.0
  %323 = vmatprep.subr.mxu0 0.0
  %324 = vmatpush1.msra.mxu0 0.0
  %325 = vmatprep.subr.mxu0 0.0
  %326 = vmatpush1.msra.mxu0 0.0
  %327 = vmatprep.subr.mxu0 0.0
  %328 = vmatpush1.msra.mxu0 0.0
  %329 = vmatprep.subr.mxu0 0.0
  %330 = vmatpush1.msra.mxu0 0.0
  %331 = vmatprep.mubr.f32.mxu0 0.0
  %332 = vmatmul.mubr.f32.gmra.mrb[0].mxu0 %v259
  %v333 = vpop.f32.mrb[0].mxu0
  %v334 = vadd.f32 0.0, %v333
  %v335 = vpop.f32.mrb[0].mxu0
  %336 = vmatprep.mubr.f32.mxu0 0.0
  %337 = vmatmul.mubr.f32.gmra.mrb[0].mxu0 %v262
  %v338 = vpop.f32.mrb[0].mxu0
  %v339 = vadd.f32 0.0, %v338
  %v340 = vpop.f32.mrb[0].mxu0
  %341 = vdwg.mxu0
  %344 = vrot.lane.b32.xlu0 %v334, 4
  %v345 = vpop.permute.xlu0 %344
  %346 = vrot.lane.b32.xlu0 %v339, 4
  %v347 = vpop.permute.xlu0 %346
  %v350 = vadd.f32 %v106, %v345
  %v351 = vadd.f32 %v111, %v347
  %v352 = vxor.u32 %v350, 2147483648
  %v353 = vxor.u32 %v351, 2147483648
  %v354 = vmul.f32 %v352, 1.442695
  %v355 = vpow.pop %v354
  %v356 = vmul.f32 %v353, 1.442695
  %v357 = vpow.pop %v356
  %v358 = vadd.f32 %v355, 1.0
  %v359 = vadd.f32 %v357, 1.0
  %v360 = vrcp.pop %v358
  %v361 = vmul.f32 1.0, %v360
  %v362 = vrcp.pop %v359
  %v363 = vmul.f32 1.0, %v362
  %v364 = vmul.f32 %v350, %v361
  %v365 = vmul.f32 %v351, %v363
  %s366 = scalar_lea.vmem %s2, 32
  %v367 = vld [vmem:[%s366] sm:$0xff]
  %v368 = vld [vmem:[%s366 + $0x8] sm:$0xff]
  %v369 = vld [vmem:[%s366 + $0x14] sm:$0x1]
  %v370 = vlaneseq
  %v371 = vshrl.u32 %v370, 7
  %v372 = vsub.s32 0, %v371
  %v373 = vrot.slane %v369, %v372
  %376 = vrot.lane.b32.xlu0 %v364, 124
  %v377 = vpop.permute.xlu0 %376
  %378 = vrot.lane.b32.xlu0 %v365, 124
  %v379 = vpop.permute.xlu0 %378
  %v380 = vsel %vm32, %v377, 0
  %v382 = vsel %vm32, %v379, 0
  %384 = vmatprep.subr.mxu0 0.0
  %385 = vmatpush1.msra.mxu0 %v367
  %386 = vmatprep.subr.mxu0 0.0
  %387 = vmatpush1.msra.mxu0 %v368
  %388 = vmatprep.subr.mxu0 0.0
  %389 = vmatpush1.msra.mxu0 0.0
  %390 = vmatprep.subr.mxu0 0.0
  %391 = vmatpush1.msra.mxu0 0.0
  %392 = vmatprep.subr.mxu0 0.0
  %393 = vmatpush1.msra.mxu0 0.0
  %394 = vmatprep.subr.mxu0 0.0
  %395 = vmatpush1.msra.mxu0 0.0
  %396 = vmatprep.subr.mxu0 0.0
  %397 = vmatpush1.msra.mxu0 0.0
  %398 = vmatprep.subr.mxu0 0.0
  %399 = vmatpush1.msra.mxu0 0.0
  %400 = vmatprep.subr.mxu0 0.0
  %401 = vmatpush1.msra.mxu0 0.0
  %402 = vmatprep.subr.mxu0 0.0
  %403 = vmatpush1.msra.mxu0 0.0
  %404 = vmatprep.subr.mxu0 0.0
  %405 = vmatpush1.msra.mxu0 0.0
  %406 = vmatprep.subr.mxu0 0.0
  %407 = vmatpush1.msra.mxu0 0.0
  %408 = vmatprep.subr.mxu0 0.0
  %409 = vmatpush1.msra.mxu0 0.0
  %410 = vmatprep.subr.mxu0 0.0
  %411 = vmatpush1.msra.mxu0 0.0
  %412 = vmatprep.subr.mxu0 0.0
  %413 = vmatpush1.msra.mxu0 0.0
  %414 = vmatprep.subr.mxu0 0.0
  %415 = vmatpush1.msra.mxu0 0.0
  %416 = vmatprep.subr.mxu0 0.0
  %417 = vmatpush1.msra.mxu0 0.0
  %418 = vmatprep.subr.mxu0 0.0
  %419 = vmatpush1.msra.mxu0 0.0
  %420 = vmatprep.subr.mxu0 0.0
  %421 = vmatpush1.msra.mxu0 0.0
  %422 = vmatprep.subr.mxu0 0.0
  %423 = vmatpush1.msra.mxu0 0.0
  %424 = vmatprep.subr.mxu0 0.0
  %425 = vmatpush1.msra.mxu0 0.0
  %426 = vmatprep.subr.mxu0 0.0
  %427 = vmatpush1.msra.mxu0 0.0
  %428 = vmatprep.subr.mxu0 0.0
  %429 = vmatpush1.msra.mxu0 0.0
  %430 = vmatprep.subr.mxu0 0.0
  %431 = vmatpush1.msra.mxu0 0.0
  %432 = vmatprep.subr.mxu0 0.0
  %433 = vmatpush1.msra.mxu0 0.0
  %434 = vmatprep.subr.mxu0 0.0
  %435 = vmatpush1.msra.mxu0 0.0
  %436 = vmatprep.subr.mxu0 0.0
  %437 = vmatpush1.msra.mxu0 0.0
  %438 = vmatprep.subr.mxu0 0.0
  %439 = vmatpush1.msra.mxu0 0.0
  %440 = vmatprep.subr.mxu0 0.0
  %441 = vmatpush1.msra.mxu0 0.0
  %442 = vmatprep.subr.mxu0 0.0
  %443 = vmatpush1.msra.mxu0 0.0
  %444 = vmatprep.subr.mxu0 0.0
  %445 = vmatpush1.msra.mxu0 0.0
  %446 = vmatprep.subr.mxu0 0.0
  %447 = vmatpush1.msra.mxu0 0.0
  %448 = vmatprep.mubr.f32.mxu0 0.0
  %449 = vmatmul.mubr.f32.gmra.mrb[0].mxu0 %v380
  %v450 = vpop.f32.mrb[0].mxu0
  %v451 = vadd.f32 %v373, %v450
  %v452 = vpop.f32.mrb[0].mxu0
  %453 = vmatprep.mubr.f32.mxu0 0.0
  %454 = vmatmul.mubr.f32.gmra.mrb[0].mxu0 %v382
  %v455 = vpop.f32.mrb[0].mxu0
  %v456 = vadd.f32 %v373, %v455
  %v457 = vpop.f32.mrb[0].mxu0
  %458 = vdwg.mxu0
  %v459 = vxor.u32 %v451, 2147483648
  %v460 = vxor.u32 %v456, 2147483648
  %v461 = vmul.f32 %v459, 1.442695
  %v462 = vpow.pop %v461
  %v463 = vmul.f32 %v460, 1.442695
  %v464 = vpow.pop %v463
  %v465 = vadd.f32 %v462, 1.0
  %v466 = vadd.f32 %v464, 1.0
  %v467 = vrcp.pop %v465
  %v468 = vmul.f32 1.0, %v467
  %v469 = vrcp.pop %v466
  %v470 = vmul.f32 1.0, %v469
  %473 = vrot.lane.b32.xlu0 %v468, 4
  %v474 = vpop.permute.xlu0 %473
  %475 = vrot.lane.b32.xlu0 %v470, 4
  %v476 = vpop.permute.xlu0 %475
  %v479 = vmul.f32 %v205, %v474
  %v480 = vmul.f32 %v210, %v476
  %v481 = vmul.f32 %v215, %v474
  %v482 = vmul.f32 %v220, %v476
  %v483 = vmul.f32 %v225, %v474
  %v484 = vmul.f32 %v230, %v476
  %v485 = vld [vmem:[%s366 + $0x15] sm:$0xf]
  %492 = vrot.lane.b32.xlu0 %v479, 124
  %v493 = vpop.permute.xlu0 %492
  %494 = vrot.lane.b32.xlu0 %v480, 124
  %v495 = vpop.permute.xlu0 %494
  %496 = vrot.lane.b32.xlu0 %v481, 124
  %v497 = vpop.permute.xlu0 %496
  %498 = vrot.lane.b32.xlu0 %v482, 124
  %v499 = vpop.permute.xlu0 %498
  %500 = vrot.lane.b32.xlu0 %v483, 124
  %v501 = vpop.permute.xlu0 %500
  %502 = vrot.lane.b32.xlu0 %v484, 124
  %v503 = vpop.permute.xlu0 %502
  %v504 = vsel %vm115, %v493, 0
  %v506 = vsel %vm115, %v495, 0
  %v508 = vsel %vm115, %v497, 0
  %v510 = vsel %vm115, %v499, 0
  %v512 = vsel %vm115, %v501, 0
  %v514 = vsel %vm115, %v503, 0
  %v517 = vsel %vm134, %v485, 0
  %519 = vmatprep.subr.mxu0 0.0
  %520 = vmatpush1.msra.mxu0 %v517
  %521 = vmatprep.subr.mxu0 0.0
  %522 = vmatpush1.msra.mxu0 0.0
  %523 = vmatprep.subr.mxu0 0.0
  %524 = vmatpush1.msra.mxu0 0.0
  %525 = vmatprep.subr.mxu0 0.0
  %526 = vmatpush1.msra.mxu0 0.0
  %527 = vmatprep.subr.mxu0 0.0
  %528 = vmatpush1.msra.mxu0 0.0
  %529 = vmatprep.subr.mxu0 0.0
  %530 = vmatpush1.msra.mxu0 0.0
  %531 = vmatprep.subr.mxu0 0.0
  %532 = vmatpush1.msra.mxu0 0.0
  %533 = vmatprep.subr.mxu0 0.0
  %534 = vmatpush1.msra.mxu0 0.0
  %535 = vmatprep.subr.mxu0 0.0
  %536 = vmatpush1.msra.mxu0 0.0
  %537 = vmatprep.subr.mxu0 0.0
  %538 = vmatpush1.msra.mxu0 0.0
  %539 = vmatprep.subr.mxu0 0.0
  %540 = vmatpush1.msra.mxu0 0.0
  %541 = vmatprep.subr.mxu0 0.0
  %542 = vmatpush1.msra.mxu0 0.0
  %543 = vmatprep.subr.mxu0 0.0
  %544 = vmatpush1.msra.mxu0 0.0
  %545 = vmatprep.subr.mxu0 0.0
  %546 = vmatpush1.msra.mxu0 0.0
  %547 = vmatprep.subr.mxu0 0.0
  %548 = vmatpush1.msra.mxu0 0.0
  %549 = vmatprep.subr.mxu0 0.0
  %550 = vmatpush1.msra.mxu0 0.0
  %551 = vmatprep.subr.mxu0 0.0
  %552 = vmatpush1.msra.mxu0 0.0
  %553 = vmatprep.subr.mxu0 0.0
  %554 = vmatpush1.msra.mxu0 0.0
  %555 = vmatprep.subr.mxu0 0.0
  %556 = vmatpush1.msra.mxu0 0.0
  %557 = vmatprep.subr.mxu0 0.0
  %558 = vmatpush1.msra.mxu0 0.0
  %559 = vmatprep.subr.mxu0 0.0
  %560 = vmatpush1.msra.mxu0 0.0
  %561 = vmatprep.subr.mxu0 0.0
  %562 = vmatpush1.msra.mxu0 0.0
  %563 = vmatprep.subr.mxu0 0.0
  %564 = vmatpush1.msra.mxu0 0.0
  %565 = vmatprep.subr.mxu0 0.0
  %566 = vmatpush1.msra.mxu0 0.0
  %567 = vmatprep.subr.mxu0 0.0
  %568 = vmatpush1.msra.mxu0 0.0
  %569 = vmatprep.subr.mxu0 0.0
  %570 = vmatpush1.msra.mxu0 0.0
  %571 = vmatprep.subr.mxu0 0.0
  %572 = vmatpush1.msra.mxu0 0.0
  %573 = vmatprep.subr.mxu0 0.0
  %574 = vmatpush1.msra.mxu0 0.0
  %575 = vmatprep.subr.mxu0 0.0
  %576 = vmatpush1.msra.mxu0 0.0
  %577 = vmatprep.subr.mxu0 0.0
  %578 = vmatpush1.msra.mxu0 0.0
  %579 = vmatprep.subr.mxu0 0.0
  %580 = vmatpush1.msra.mxu0 0.0
  %581 = vmatprep.subr.mxu0 0.0
  %582 = vmatpush1.msra.mxu0 0.0
  %583 = vmatprep.mubr.f32.mxu0 0.0
  %584 = vmatmul.mubr.f32.gmra.mrb[0].mxu0 %v504
  %v585 = vpop.f32.mrb[0].mxu0
  %v586 = vadd.f32 0.0, %v585
  %v587 = vpop.f32.mrb[0].mxu0
  %588 = vmatprep.mubr.f32.mxu0 0.0
  %589 = vmatmul.mubr.f32.gmra.mrb[0].mxu0 %v506
  %v590 = vpop.f32.mrb[0].mxu0
  %v591 = vadd.f32 0.0, %v590
  %v592 = vpop.f32.mrb[0].mxu0
  %593 = vmatprep.mubr.f32.mxu0 0.0
  %594 = vmatmul.mubr.f32.gmra.mrb[0].mxu0 %v508
  %v595 = vpop.f32.mrb[0].mxu0
  %v596 = vadd.f32 0.0, %v595
  %v597 = vpop.f32.mrb[0].mxu0
  %598 = vmatprep.mubr.f32.mxu0 0.0
  %599 = vmatmul.mubr.f32.gmra.mrb[0].mxu0 %v510
  %v600 = vpop.f32.mrb[0].mxu0
  %v601 = vadd.f32 0.0, %v600
  %v602 = vpop.f32.mrb[0].mxu0
  %603 = vmatprep.mubr.f32.mxu0 0.0
  %604 = vmatmul.mubr.f32.gmra.mrb[0].mxu0 %v512
  %v605 = vpop.f32.mrb[0].mxu0
  %v606 = vadd.f32 0.0, %v605
  %v607 = vpop.f32.mrb[0].mxu0
  %608 = vmatprep.mubr.f32.mxu0 0.0
  %609 = vmatmul.mubr.f32.gmra.mrb[0].mxu0 %v514
  %v610 = vpop.f32.mrb[0].mxu0
  %v611 = vadd.f32 0.0, %v610
  %v612 = vpop.f32.mrb[0].mxu0
  %613 = vdwg.mxu0
  %v614 = vmul.f32 %v586, %v586
  %v615 = vmul.f32 %v591, %v591
  %v616 = vmul.f32 %v596, %v596
  %v617 = vmul.f32 %v601, %v601
  %v618 = vadd.f32 %v614, %v616
  %v619 = vadd.f32 %v615, %v617
  %v620 = vmul.f32 %v606, %v606
  %v621 = vmul.f32 %v611, %v611
  %v622 = vadd.f32 %v618, %v620
  %v623 = vadd.f32 %v619, %v621
  %v624 = vrsqrt.pop %v622
  %v625 = vmul.f32 %v622, %v624
  %vm626 = vcmp.eq.f32.partialorder %v622, inf
  %v627 = vsel %vm626, %v622, %v625
  %vm628 = vcmp.eq.f32.partialorder %v622, 0.0
  %v629 = vand.u32 %v622, 2147483648
  %v630 = vsel %vm628, %v629, %v627
  %v631 = vrsqrt.pop %v623
  %v632 = vmul.f32 %v623, %v631
  %vm633 = vcmp.eq.f32.partialorder %v623, inf
  %v634 = vsel %vm633, %v623, %v632
  %vm635 = vcmp.eq.f32.partialorder %v623, 0.0
  %v636 = vand.u32 %v623, 2147483648
  %v637 = vsel %vm635, %v636, %v634
  %v638 = vld [vmem:[%s366 + $0x10] sm:$0xf]
  %v640 = vsel %vm115, %v630, 0
  %v643 = vsel %vm115, %v637, 0
  %v646 = vsel %vm134, %v638, 0
  %648 = vmatprep.subr.mxu0 0.0
  %649 = vmatpush1.msra.mxu0 %v646
  %650 = vmatprep.subr.mxu0 0.0
  %651 = vmatpush1.msra.mxu0 0.0
  %652 = vmatprep.subr.mxu0 0.0
  %653 = vmatpush1.msra.mxu0 0.0
  %654 = vmatprep.subr.mxu0 0.0
  %655 = vmatpush1.msra.mxu0 0.0
  %656 = vmatprep.subr.mxu0 0.0
  %657 = vmatpush1.msra.mxu0 0.0
  %658 = vmatprep.subr.mxu0 0.0
  %659 = vmatpush1.msra.mxu0 0.0
  %660 = vmatprep.subr.mxu0 0.0
  %661 = vmatpush1.msra.mxu0 0.0
  %662 = vmatprep.subr.mxu0 0.0
  %663 = vmatpush1.msra.mxu0 0.0
  %664 = vmatprep.subr.mxu0 0.0
  %665 = vmatpush1.msra.mxu0 0.0
  %666 = vmatprep.subr.mxu0 0.0
  %667 = vmatpush1.msra.mxu0 0.0
  %668 = vmatprep.subr.mxu0 0.0
  %669 = vmatpush1.msra.mxu0 0.0
  %670 = vmatprep.subr.mxu0 0.0
  %671 = vmatpush1.msra.mxu0 0.0
  %672 = vmatprep.subr.mxu0 0.0
  %673 = vmatpush1.msra.mxu0 0.0
  %674 = vmatprep.subr.mxu0 0.0
  %675 = vmatpush1.msra.mxu0 0.0
  %676 = vmatprep.subr.mxu0 0.0
  %677 = vmatpush1.msra.mxu0 0.0
  %678 = vmatprep.subr.mxu0 0.0
  %679 = vmatpush1.msra.mxu0 0.0
  %680 = vmatprep.subr.mxu0 0.0
  %681 = vmatpush1.msra.mxu0 0.0
  %682 = vmatprep.subr.mxu0 0.0
  %683 = vmatpush1.msra.mxu0 0.0
  %684 = vmatprep.subr.mxu0 0.0
  %685 = vmatpush1.msra.mxu0 0.0
  %686 = vmatprep.subr.mxu0 0.0
  %687 = vmatpush1.msra.mxu0 0.0
  %688 = vmatprep.subr.mxu0 0.0
  %689 = vmatpush1.msra.mxu0 0.0
  %690 = vmatprep.subr.mxu0 0.0
  %691 = vmatpush1.msra.mxu0 0.0
  %692 = vmatprep.subr.mxu0 0.0
  %693 = vmatpush1.msra.mxu0 0.0
  %694 = vmatprep.subr.mxu0 0.0
  %695 = vmatpush1.msra.mxu0 0.0
  %696 = vmatprep.subr.mxu0 0.0
  %697 = vmatpush1.msra.mxu0 0.0
  %698 = vmatprep.subr.mxu0 0.0
  %699 = vmatpush1.msra.mxu0 0.0
  %700 = vmatprep.subr.mxu0 0.0
  %701 = vmatpush1.msra.mxu0 0.0
  %702 = vmatprep.subr.mxu0 0.0
  %703 = vmatpush1.msra.mxu0 0.0
  %704 = vmatprep.subr.mxu0 0.0
  %705 = vmatpush1.msra.mxu0 0.0
  %706 = vmatprep.subr.mxu0 0.0
  %707 = vmatpush1.msra.mxu0 0.0
  %708 = vmatprep.subr.mxu0 0.0
  %709 = vmatpush1.msra.mxu0 0.0
  %710 = vmatprep.subr.mxu0 0.0
  %711 = vmatpush1.msra.mxu0 0.0
  %712 = vmatprep.mubr.f32.mxu0 0.0
  %713 = vmatmul.mubr.f32.gmra.mrb[0].mxu0 %v640
  %v714 = vpop.f32.mrb[0].mxu0
  %v715 = vadd.f32 0.0, %v714
  %v716 = vpop.f32.mrb[0].mxu0
  %717 = vmatprep.mubr.f32.mxu0 0.0
  %718 = vmatmul.mubr.f32.gmra.mrb[0].mxu0 %v643
  %v719 = vpop.f32.mrb[0].mxu0
  %v720 = vadd.f32 0.0, %v719
  %v721 = vpop.f32.mrb[0].mxu0
  %722 = vdwg.mxu0
  %725 = vrot.lane.b32.xlu0 %v715, 4
  %v726 = vpop.permute.xlu0 %725
  %727 = vrot.lane.b32.xlu0 %v720, 4
  %v728 = vpop.permute.xlu0 %727
  %v731 = vadd.f32 %v451, %v726
  %v732 = vadd.f32 %v456, %v728
  %v733 = vxor.u32 %v731, 2147483648
  %v734 = vxor.u32 %v732, 2147483648
  %v735 = vmul.f32 %v733, 1.442695
  %v736 = vpow.pop %v735
  %v737 = vmul.f32 %v734, 1.442695
  %v738 = vpow.pop %v737
  %v739 = vadd.f32 %v736, 1.0
  %v740 = vadd.f32 %v738, 1.0
  %v741 = vrcp.pop %v739
  %v742 = vmul.f32 1.0, %v741
  %v743 = vrcp.pop %v740
  %v744 = vmul.f32 1.0, %v743
  %v745 = vmul.f32 %v731, %v742
  %v746 = vmul.f32 %v732, %v744
  %s747 = scalar_lea.vmem %s2, 64
  %v748 = vld [vmem:[%s747] sm:$0xff]
  %v749 = vld [vmem:[%s747 + $0x8] sm:$0xff]
  %v750 = vld [vmem:[%s747 + $0x14] sm:$0x1]
  %v751 = vlaneseq
  %v752 = vshrl.u32 %v751, 7
  %v753 = vsub.s32 0, %v752
  %v754 = vrot.slane %v750, %v753
  %757 = vrot.lane.b32.xlu0 %v745, 124
  %v758 = vpop.permute.xlu0 %757
  %759 = vrot.lane.b32.xlu0 %v746, 124
  %v760 = vpop.permute.xlu0 %759
  %v761 = vsel %vm32, %v758, 0
  %v763 = vsel %vm32, %v760, 0
  %765 = vmatprep.subr.mxu0 0.0
  %766 = vmatpush1.msra.mxu0 %v748
  %767 = vmatprep.subr.mxu0 0.0
  %768 = vmatpush1.msra.mxu0 %v749
  %769 = vmatprep.subr.mxu0 0.0
  %770 = vmatpush1.msra.mxu0 0.0
  %771 = vmatprep.subr.mxu0 0.0
  %772 = vmatpush1.msra.mxu0 0.0
  %773 = vmatprep.subr.mxu0 0.0
  %774 = vmatpush1.msra.mxu0 0.0
  %775 = vmatprep.subr.mxu0 0.0
  %776 = vmatpush1.msra.mxu0 0.0
  %777 = vmatprep.subr.mxu0 0.0
  %778 = vmatpush1.msra.mxu0 0.0
  %779 = vmatprep.subr.mxu0 0.0
  %780 = vmatpush1.msra.mxu0 0.0
  %781 = vmatprep.subr.mxu0 0.0
  %782 = vmatpush1.msra.mxu0 0.0
  %783 = vmatprep.subr.mxu0 0.0
  %784 = vmatpush1.msra.mxu0 0.0
  %785 = vmatprep.subr.mxu0 0.0
  %786 = vmatpush1.msra.mxu0 0.0
  %787 = vmatprep.subr.mxu0 0.0
  %788 = vmatpush1.msra.mxu0 0.0
  %789 = vmatprep.subr.mxu0 0.0
  %790 = vmatpush1.msra.mxu0 0.0
  %791 = vmatprep.subr.mxu0 0.0
  %792 = vmatpush1.msra.mxu0 0.0
  %793 = vmatprep.subr.mxu0 0.0
  %794 = vmatpush1.msra.mxu0 0.0
  %795 = vmatprep.subr.mxu0 0.0
  %796 = vmatpush1.msra.mxu0 0.0
  %797 = vmatprep.subr.mxu0 0.0
  %798 = vmatpush1.msra.mxu0 0.0
  %799 = vmatprep.subr.mxu0 0.0
  %800 = vmatpush1.msra.mxu0 0.0
  %801 = vmatprep.subr.mxu0 0.0
  %802 = vmatpush1.msra.mxu0 0.0
  %803 = vmatprep.subr.mxu0 0.0
  %804 = vmatpush1.msra.mxu0 0.0
  %805 = vmatprep.subr.mxu0 0.0
  %806 = vmatpush1.msra.mxu0 0.0
  %807 = vmatprep.subr.mxu0 0.0
  %808 = vmatpush1.msra.mxu0 0.0
  %809 = vmatprep.subr.mxu0 0.0
  %810 = vmatpush1.msra.mxu0 0.0
  %811 = vmatprep.subr.mxu0 0.0
  %812 = vmatpush1.msra.mxu0 0.0
  %813 = vmatprep.subr.mxu0 0.0
  %814 = vmatpush1.msra.mxu0 0.0
  %815 = vmatprep.subr.mxu0 0.0
  %816 = vmatpush1.msra.mxu0 0.0
  %817 = vmatprep.subr.mxu0 0.0
  %818 = vmatpush1.msra.mxu0 0.0
  %819 = vmatprep.subr.mxu0 0.0
  %820 = vmatpush1.msra.mxu0 0.0
  %821 = vmatprep.subr.mxu0 0.0
  %822 = vmatpush1.msra.mxu0 0.0
  %823 = vmatprep.subr.mxu0 0.0
  %824 = vmatpush1.msra.mxu0 0.0
  %825 = vmatprep.subr.mxu0 0.0
  %826 = vmatpush1.msra.mxu0 0.0
  %827 = vmatprep.subr.mxu0 0.0
  %828 = vmatpush1.msra.mxu0 0.0
  %829 = vmatprep.mubr.f32.mxu0 0.0
  %830 = vmatmul.mubr.f32.gmra.mrb[0].mxu0 %v761
  %v831 = vpop.f32.mrb[0].mxu0
  %v832 = vadd.f32 %v754, %v831
  %v833 = vpop.f32.mrb[0].mxu0
  %834 = vmatprep.mubr.f32.mxu0 0.0
  %835 = vmatmul.mubr.f32.gmra.mrb[0].mxu0 %v763
  %v836 = vpop.f32.mrb[0].mxu0
  %v837 = vadd.f32 %v754, %v836
  %v838 = vpop.f32.mrb[0].mxu0
  %839 = vdwg.mxu0
  %v840 = vxor.u32 %v832, 2147483648
  %v841 = vxor.u32 %v837, 2147483648
  %v842 = vmul.f32 %v840, 1.442695
  %v843 = vpow.pop %v842
  %v844 = vmul.f32 %v841, 1.442695
  %v845 = vpow.pop %v844
  %v846 = vadd.f32 %v843, 1.0
  %v847 = vadd.f32 %v845, 1.0
  %v848 = vrcp.pop %v846
  %v849 = vmul.f32 1.0, %v848
  %v850 = vrcp.pop %v847
  %v851 = vmul.f32 1.0, %v850
  %854 = vrot.lane.b32.xlu0 %v849, 4
  %v855 = vpop.permute.xlu0 %854
  %856 = vrot.lane.b32.xlu0 %v851, 4
  %v857 = vpop.permute.xlu0 %856
  %v860 = vmul.f32 %v586, %v855
  %v861 = vmul.f32 %v591, %v857
  %v862 = vmul.f32 %v596, %v855
  %v863 = vmul.f32 %v601, %v857
  %v864 = vmul.f32 %v606, %v855
  %v865 = vmul.f32 %v611, %v857
  %v866 = vld [vmem:[%s747 + $0x15] sm:$0xf]
  %873 = vrot.lane.b32.xlu0 %v860, 124
  %v874 = vpop.permute.xlu0 %873
  %875 = vrot.lane.b32.xlu0 %v861, 124
  %v876 = vpop.permute.xlu0 %875
  %877 = vrot.lane.b32.xlu0 %v862, 124
  %v878 = vpop.permute.xlu0 %877
  %879 = vrot.lane.b32.xlu0 %v863, 124
  %v880 = vpop.permute.xlu0 %879
  %881 = vrot.lane.b32.xlu0 %v864, 124
  %v882 = vpop.permute.xlu0 %881
  %883 = vrot.lane.b32.xlu0 %v865, 124
  %v884 = vpop.permute.xlu0 %883
  %v885 = vsel %vm115, %v874, 0
  %v887 = vsel %vm115, %v876, 0
  %v889 = vsel %vm115, %v878, 0
  %v891 = vsel %vm115, %v880, 0
  %v893 = vsel %vm115, %v882, 0
  %v895 = vsel %vm115, %v884, 0
  %v898 = vsel %vm134, %v866, 0
  %900 = vmatprep.subr.mxu0 0.0
  %901 = vmatpush1.msra.mxu0 %v898
  %902 = vmatprep.subr.mxu0 0.0
  %903 = vmatpush1.msra.mxu0 0.0
  %904 = vmatprep.subr.mxu0 0.0
  %905 = vmatpush1.msra.mxu0 0.0
  %906 = vmatprep.subr.mxu0 0.0
  %907 = vmatpush1.msra.mxu0 0.0
  %908 = vmatprep.subr.mxu0 0.0
  %909 = vmatpush1.msra.mxu0 0.0
  %910 = vmatprep.subr.mxu0 0.0
  %911 = vmatpush1.msra.mxu0 0.0
  %912 = vmatprep.subr.mxu0 0.0
  %913 = vmatpush1.msra.mxu0 0.0
  %914 = vmatprep.subr.mxu0 0.0
  %915 = vmatpush1.msra.mxu0 0.0
  %916 = vmatprep.subr.mxu0 0.0
  %917 = vmatpush1.msra.mxu0 0.0
  %918 = vmatprep.subr.mxu0 0.0
  %919 = vmatpush1.msra.mxu0 0.0
  %920 = vmatprep.subr.mxu0 0.0
  %921 = vmatpush1.msra.mxu0 0.0
  %922 = vmatprep.subr.mxu0 0.0
  %923 = vmatpush1.msra.mxu0 0.0
  %924 = vmatprep.subr.mxu0 0.0
  %925 = vmatpush1.msra.mxu0 0.0
  %926 = vmatprep.subr.mxu0 0.0
  %927 = vmatpush1.msra.mxu0 0.0
  %928 = vmatprep.subr.mxu0 0.0
  %929 = vmatpush1.msra.mxu0 0.0
  %930 = vmatprep.subr.mxu0 0.0
  %931 = vmatpush1.msra.mxu0 0.0
  %932 = vmatprep.subr.mxu0 0.0
  %933 = vmatpush1.msra.mxu0 0.0
  %934 = vmatprep.subr.mxu0 0.0
  %935 = vmatpush1.msra.mxu0 0.0
  %936 = vmatprep.subr.mxu0 0.0
  %937 = vmatpush1.msra.mxu0 0.0
  %938 = vmatprep.subr.mxu0 0.0
  %939 = vmatpush1.msra.mxu0 0.0
  %940 = vmatprep.subr.mxu0 0.0
  %941 = vmatpush1.msra.mxu0 0.0
  %942 = vmatprep.subr.mxu0 0.0
  %943 = vmatpush1.msra.mxu0 0.0
  %944 = vmatprep.subr.mxu0 0.0
  %945 = vmatpush1.msra.mxu0 0.0
  %946 = vmatprep.subr.mxu0 0.0
  %947 = vmatpush1.msra.mxu0 0.0
  %948 = vmatprep.subr.mxu0 0.0
  %949 = vmatpush1.msra.mxu0 0.0
  %950 = vmatprep.subr.mxu0 0.0
  %951 = vmatpush1.msra.mxu0 0.0
  %952 = vmatprep.subr.mxu0 0.0
  %953 = vmatpush1.msra.mxu0 0.0
  %954 = vmatprep.subr.mxu0 0.0
  %955 = vmatpush1.msra.mxu0 0.0
  %956 = vmatprep.subr.mxu0 0.0
  %957 = vmatpush1.msra.mxu0 0.0
  %958 = vmatprep.subr.mxu0 0.0
  %959 = vmatpush1.msra.mxu0 0.0
  %960 = vmatprep.subr.mxu0 0.0
  %961 = vmatpush1.msra.mxu0 0.0
  %962 = vmatprep.subr.mxu0 0.0
  %963 = vmatpush1.msra.mxu0 0.0
  %964 = vmatprep.mubr.f32.mxu0 0.0
  %965 = vmatmul.mubr.f32.gmra.mrb[0].mxu0 %v885
  %v966 = vpop.f32.mrb[0].mxu0
  %v967 = vadd.f32 0.0, %v966
  %v968 = vpop.f32.mrb[0].mxu0
  %969 = vmatprep.mubr.f32.mxu0 0.0
  %970 = vmatmul.mubr.f32.gmra.mrb[0].mxu0 %v887
  %v971 = vpop.f32.mrb[0].mxu0
  %v972 = vadd.f32 0.0, %v971
  %v973 = vpop.f32.mrb[0].mxu0
  %974 = vmatprep.mubr.f32.mxu0 0.0
  %975 = vmatmul.mubr.f32.gmra.mrb[0].mxu0 %v889
  %v976 = vpop.f32.mrb[0].mxu0
  %v977 = vadd.f32 0.0, %v976
  %v978 = vpop.f32.mrb[0].mxu0
  %979 = vmatprep.mubr.f32.mxu0 0.0
  %980 = vmatmul.mubr.f32.gmra.mrb[0].mxu0 %v891
  %v981 = vpop.f32.mrb[0].mxu0
  %v982 = vadd.f32 0.0, %v981
  %v983 = vpop.f32.mrb[0].mxu0
  %984 = vmatprep.mubr.f32.mxu0 0.0
  %985 = vmatmul.mubr.f32.gmra.mrb[0].mxu0 %v893
  %v986 = vpop.f32.mrb[0].mxu0
  %v987 = vadd.f32 0.0, %v986
  %v988 = vpop.f32.mrb[0].mxu0
  %989 = vmatprep.mubr.f32.mxu0 0.0
  %990 = vmatmul.mubr.f32.gmra.mrb[0].mxu0 %v895
  %v991 = vpop.f32.mrb[0].mxu0
  %v992 = vadd.f32 0.0, %v991
  %v993 = vpop.f32.mrb[0].mxu0
  %994 = vdwg.mxu0
  %v995 = vmul.f32 %v967, %v967
  %v996 = vmul.f32 %v972, %v972
  %v997 = vmul.f32 %v977, %v977
  %v998 = vmul.f32 %v982, %v982
  %v999 = vadd.f32 %v995, %v997
  %v1000 = vadd.f32 %v996, %v998
  %v1001 = vmul.f32 %v987, %v987
  %v1002 = vmul.f32 %v992, %v992
  %v1003 = vadd.f32 %v999, %v1001
  %v1004 = vadd.f32 %v1000, %v1002
  %v1005 = vrsqrt.pop %v1003
  %v1006 = vmul.f32 %v1003, %v1005
  %vm1007 = vcmp.eq.f32.partialorder %v1003, inf
  %v1008 = vsel %vm1007, %v1003, %v1006
  %vm1009 = vcmp.eq.f32.partialorder %v1003, 0.0
  %v1010 = vand.u32 %v1003, 2147483648
  %v1011 = vsel %vm1009, %v1010, %v1008
  %v1012 = vrsqrt.pop %v1004
  %v1013 = vmul.f32 %v1004, %v1012
  %vm1014 = vcmp.eq.f32.partialorder %v1004, inf
  %v1015 = vsel %vm1014, %v1004, %v1013
  %vm1016 = vcmp.eq.f32.partialorder %v1004, 0.0
  %v1017 = vand.u32 %v1004, 2147483648
  %v1018 = vsel %vm1016, %v1017, %v1015
  %v1019 = vld [vmem:[%s747 + $0x10] sm:$0xf]
  %v1021 = vsel %vm115, %v1011, 0
  %v1024 = vsel %vm115, %v1018, 0
  %v1027 = vsel %vm134, %v1019, 0
  %1029 = vmatprep.subr.mxu0 0.0
  %1030 = vmatpush1.msra.mxu0 %v1027
  %1031 = vmatprep.subr.mxu0 0.0
  %1032 = vmatpush1.msra.mxu0 0.0
  %1033 = vmatprep.subr.mxu0 0.0
  %1034 = vmatpush1.msra.mxu0 0.0
  %1035 = vmatprep.subr.mxu0 0.0
  %1036 = vmatpush1.msra.mxu0 0.0
  %1037 = vmatprep.subr.mxu0 0.0
  %1038 = vmatpush1.msra.mxu0 0.0
  %1039 = vmatprep.subr.mxu0 0.0
  %1040 = vmatpush1.msra.mxu0 0.0
  %1041 = vmatprep.subr.mxu0 0.0
  %1042 = vmatpush1.msra.mxu0 0.0
  %1043 = vmatprep.subr.mxu0 0.0
  %1044 = vmatpush1.msra.mxu0 0.0
  %1045 = vmatprep.subr.mxu0 0.0
  %1046 = vmatpush1.msra.mxu0 0.0
  %1047 = vmatprep.subr.mxu0 0.0
  %1048 = vmatpush1.msra.mxu0 0.0
  %1049 = vmatprep.subr.mxu0 0.0
  %1050 = vmatpush1.msra.mxu0 0.0
  %1051 = vmatprep.subr.mxu0 0.0
  %1052 = vmatpush1.msra.mxu0 0.0
  %1053 = vmatprep.subr.mxu0 0.0
  %1054 = vmatpush1.msra.mxu0 0.0
  %1055 = vmatprep.subr.mxu0 0.0
  %1056 = vmatpush1.msra.mxu0 0.0
  %1057 = vmatprep.subr.mxu0 0.0
  %1058 = vmatpush1.msra.mxu0 0.0
  %1059 = vmatprep.subr.mxu0 0.0
  %1060 = vmatpush1.msra.mxu0 0.0
  %1061 = vmatprep.subr.mxu0 0.0
  %1062 = vmatpush1.msra.mxu0 0.0
  %1063 = vmatprep.subr.mxu0 0.0
  %1064 = vmatpush1.msra.mxu0 0.0
  %1065 = vmatprep.subr.mxu0 0.0
  %1066 = vmatpush1.msra.mxu0 0.0
  %1067 = vmatprep.subr.mxu0 0.0
  %1068 = vmatpush1.msra.mxu0 0.0
  %1069 = vmatprep.subr.mxu0 0.0
  %1070 = vmatpush1.msra.mxu0 0.0
  %1071 = vmatprep.subr.mxu0 0.0
  %1072 = vmatpush1.msra.mxu0 0.0
  %1073 = vmatprep.subr.mxu0 0.0
  %1074 = vmatpush1.msra.mxu0 0.0
  %1075 = vmatprep.subr.mxu0 0.0
  %1076 = vmatpush1.msra.mxu0 0.0
  %1077 = vmatprep.subr.mxu0 0.0
  %1078 = vmatpush1.msra.mxu0 0.0
  %1079 = vmatprep.subr.mxu0 0.0
  %1080 = vmatpush1.msra.mxu0 0.0
  %1081 = vmatprep.subr.mxu0 0.0
  %1082 = vmatpush1.msra.mxu0 0.0
  %1083 = vmatprep.subr.mxu0 0.0
  %1084 = vmatpush1.msra.mxu0 0.0
  %1085 = vmatprep.subr.mxu0 0.0
  %1086 = vmatpush1.msra.mxu0 0.0
  %1087 = vmatprep.subr.mxu0 0.0
  %1088 = vmatpush1.msra.mxu0 0.0
  %1089 = vmatprep.subr.mxu0 0.0
  %1090 = vmatpush1.msra.mxu0 0.0
  %1091 = vmatprep.subr.mxu0 0.0
  %1092 = vmatpush1.msra.mxu0 0.0
  %1093 = vmatprep.mubr.f32.mxu0 0.0
  %1094 = vmatmul.mubr.f32.gmra.mrb[0].mxu0 %v1021
  %v1095 = vpop.f32.mrb[0].mxu0
  %v1096 = vadd.f32 0.0, %v1095
  %v1097 = vpop.f32.mrb[0].mxu0
  %1098 = vmatprep.mubr.f32.mxu0 0.0
  %1099 = vmatmul.mubr.f32.gmra.mrb[0].mxu0 %v1024
  %v1100 = vpop.f32.mrb[0].mxu0
  %v1101 = vadd.f32 0.0, %v1100
  %v1102 = vpop.f32.mrb[0].mxu0
  %1103 = vdwg.mxu0
  %1106 = vrot.lane.b32.xlu0 %v1096, 4
  %v1107 = vpop.permute.xlu0 %1106
  %1108 = vrot.lane.b32.xlu0 %v1101, 4
  %v1109 = vpop.permute.xlu0 %1108
  %v1112 = vadd.f32 %v832, %v1107
  %v1113 = vadd.f32 %v837, %v1109
  %v1114 = vxor.u32 %v1112, 2147483648
  %v1115 = vxor.u32 %v1113, 2147483648
  %v1116 = vmul.f32 %v1114, 1.442695
  %v1117 = vpow.pop %v1116
  %v1118 = vmul.f32 %v1115, 1.442695
  %v1119 = vpow.pop %v1118
  %v1120 = vadd.f32 %v1117, 1.0
  %v1121 = vadd.f32 %v1119, 1.0
  %v1122 = vrcp.pop %v1120
  %v1123 = vmul.f32 1.0, %v1122
  %v1124 = vrcp.pop %v1121
  %v1125 = vmul.f32 1.0, %v1124
  %v1126 = vmul.f32 %v1112, %v1123
  %v1127 = vmul.f32 %v1113, %v1125
  %v1128 = vld [vmem:[%s3] sm:$0xff]
  %v1129 = vld [vmem:[%s3 + $0x8] sm:$0xff]
  %v1130 = vld [vmem:[%s3 + $0x10] sm:$0xff]
  %v1131 = vld [vmem:[%s3 + $0x18] sm:$0xff]
  %v1132 = vld [vmem:[%s3 + $0x20] sm:$0xff]
  %v1133 = vld [vmem:[%s3 + $0x28] sm:$0xff]
  %v1134 = vld [vmem:[%s3 + $0x30] sm:$0xff]
  %v1135 = vld [vmem:[%s3 + $0x38] sm:$0xff]
  %v1136 = vld [vmem:[%s3 + $0x40] sm:$0x1]
  %v1137 = vlaneseq
  %v1138 = vshrl.u32 %v1137, 7
  %v1139 = vsub.s32 0, %v1138
  %v1140 = vrot.slane %v1136, %v1139
  %1143 = vrot.lane.b32.xlu0 %v1126, 124
  %v1144 = vpop.permute.xlu0 %1143
  %1145 = vrot.lane.b32.xlu0 %v1127, 124
  %v1146 = vpop.permute.xlu0 %1145
  %vm1147 = vcmask 523264
  %v1148 = vsel %vm1147, %v1144, 0
  %v1150 = vsel %vm1147, %v1146, 0
  %1152 = vmatprep.subr.mxu0 0.0
  %1153 = vmatpush1.msra.mxu0 %v1128
  %1154 = vmatprep.subr.mxu0 0.0
  %1155 = vmatpush1.msra.mxu0 %v1129
  %1156 = vmatprep.subr.mxu0 0.0
  %1157 = vmatpush1.msra.mxu0 %v1130
  %1158 = vmatprep.subr.mxu0 0.0
  %1159 = vmatpush1.msra.mxu0 %v1131
  %1160 = vmatprep.subr.mxu0 0.0
  %1161 = vmatpush1.msra.mxu0 %v1132
  %1162 = vmatprep.subr.mxu0 0.0
  %1163 = vmatpush1.msra.mxu0 %v1133
  %1164 = vmatprep.subr.mxu0 0.0
  %1165 = vmatpush1.msra.mxu0 %v1134
  %1166 = vmatprep.subr.mxu0 0.0
  %1167 = vmatpush1.msra.mxu0 %v1135
  %1168 = vmatprep.subr.mxu0 0.0
  %1169 = vmatpush1.msra.mxu0 0.0
  %1170 = vmatprep.subr.mxu0 0.0
  %1171 = vmatpush1.msra.mxu0 0.0
  %1172 = vmatprep.subr.mxu0 0.0
  %1173 = vmatpush1.msra.mxu0 0.0
  %1174 = vmatprep.subr.mxu0 0.0
  %1175 = vmatpush1.msra.mxu0 0.0
  %1176 = vmatprep.subr.mxu0 0.0
  %1177 = vmatpush1.msra.mxu0 0.0
  %1178 = vmatprep.subr.mxu0 0.0
  %1179 = vmatpush1.msra.mxu0 0.0
  %1180 = vmatprep.subr.mxu0 0.0
  %1181 = vmatpush1.msra.mxu0 0.0
  %1182 = vmatprep.subr.mxu0 0.0
  %1183 = vmatpush1.msra.mxu0 0.0
  %1184 = vmatprep.subr.mxu0 0.0
  %1185 = vmatpush1.msra.mxu0 0.0
  %1186 = vmatprep.subr.mxu0 0.0
  %1187 = vmatpush1.msra.mxu0 0.0
  %1188 = vmatprep.subr.mxu0 0.0
  %1189 = vmatpush1.msra.mxu0 0.0
  %1190 = vmatprep.subr.mxu0 0.0
  %1191 = vmatpush1.msra.mxu0 0.0
  %1192 = vmatprep.subr.mxu0 0.0
  %1193 = vmatpush1.msra.mxu0 0.0
  %1194 = vmatprep.subr.mxu0 0.0
  %1195 = vmatpush1.msra.mxu0 0.0
  %1196 = vmatprep.subr.mxu0 0.0
  %1197 = vmatpush1.msra.mxu0 0.0
  %1198 = vmatprep.subr.mxu0 0.0
  %1199 = vmatpush1.msra.mxu0 0.0
  %1200 = vmatprep.subr.mxu0 0.0
  %1201 = vmatpush1.msra.mxu0 0.0
  %1202 = vmatprep.subr.mxu0 0.0
  %1203 = vmatpush1.msra.mxu0 0.0
  %1204 = vmatprep.subr.mxu0 0.0
  %1205 = vmatpush1.msra.mxu0 0.0
  %1206 = vmatprep.subr.mxu0 0.0
  %1207 = vmatpush1.msra.mxu0 0.0
  %1208 = vmatprep.subr.mxu0 0.0
  %1209 = vmatpush1.msra.mxu0 0.0
  %1210 = vmatprep.subr.mxu0 0.0
  %1211 = vmatpush1.msra.mxu0 0.0
  %1212 = vmatprep.subr.mxu0 0.0
  %1213 = vmatpush1.msra.mxu0 0.0
  %1214 = vmatprep.subr.mxu0 0.0
  %1215 = vmatpush1.msra.mxu0 0.0
  %1216 = vmatprep.mubr.f32.mxu0 0.0
  %1217 = vmatmul.mubr.f32.gmra.mrb[0].mxu0 %v1148
  %v1218 = vpop.f32.mrb[0].mxu0
  %v1219 = vadd.f32 %v1140, %v1218
  %v1220 = vpop.f32.mrb[0].mxu0
  %1221 = vmatprep.mubr.f32.mxu0 0.0
  %1222 = vmatmul.mubr.f32.gmra.mrb[0].mxu0 %v1150
  %v1223 = vpop.f32.mrb[0].mxu0
  %v1224 = vadd.f32 %v1140, %v1223
  %v1225 = vpop.f32.mrb[0].mxu0
  %1226 = vdwg.mxu0
  %1229 = vrot.lane.b32.xlu0 %v1219, 124
  %v1230 = vpop.permute.xlu0 %1229
  %1231 = vrot.lane.b32.xlu0 %v1224, 124
  %v1232 = vpop.permute.xlu0 %1231
  %v1235 = vmul.f32 %v967, %v1230
  %v1236 = vmul.f32 %v972, %v1232
  %v1237 = vmul.f32 %v977, %v1230
  %v1238 = vmul.f32 %v982, %v1232
  %v1239 = vmul.f32 %v987, %v1230
  %v1240 = vmul.f32 %v992, %v1232
  %1243 = vrot.lane.b32.xlu0 %v1235, 4
  %v1244 = vpop.permute.xlu0 %1243
  %1245 = vrot.lane.b32.xlu0 %v1236, 4
  %v1246 = vpop.permute.xlu0 %1245
  %1251 = vrot.lane.b32.xlu0 %v1237, 5
  %v1252 = vpop.permute.xlu0 %1251
  %1253 = vrot.lane.b32.xlu0 %v1238, 5
  %v1254 = vpop.permute.xlu0 %1253
  %1259 = vrot.lane.b32.xlu0 %v1239, 6
  %v1260 = vpop.permute.xlu0 %1259
  %1261 = vrot.lane.b32.xlu0 %v1240, 6
  %v1262 = vpop.permute.xlu0 %1261
  %vm1265 = vcmask 64512
  %v1266 = vsel %vm1265, %v1219, %v1244
  %v1267 = vsel %vm1265, %v1224, %v1246
  %vm1268 = vcmask 72704
  %v1269 = vsel %vm1268, %v1266, %v1252
  %v1270 = vsel %vm1268, %v1267, %v1254
  %vm1271 = vcmask 80896
  %v1272 = vsel %vm1271, %v1269, %v1260
  %v1273 = vsel %vm1271, %v1270, %v1262
  %vm1274 = vcmask 89088
  %1275 = vst.msk [vmem:[%s4] sm:$0xff] %vm1274, %v1272
  %1276 = vst.msk [vmem:[%s4 + $0x8] sm:$0xff] %vm1274, %v1273
  // Predicated region
  $region18: #{noise_prediction_block.1} parent=0 // pred_check
    _
  $region19: #{noise_prediction_block.1} parent=0 // pred_check_branch
    %1278 = sbr.rel (0) target = $region21
  $region20: #{noise_prediction_block.1} parent=0 // pred_region
    _
  $region21: #{noise_prediction_block.1} parent=0 // pred_fallthru
    _
  // Predicated region
  $region22: #{noise_prediction_block.1} parent=0 // pred_check
    _
  $region23: #{noise_prediction_block.1} parent=0 // pred_check_branch
    %1280 = sbr.rel (0) target = $region25
  $region24: #{noise_prediction_block.1} parent=0 // pred_region
    _
  $region25: #{noise_prediction_block.1} parent=0 // pred_fallthru
    _

</llo_original>
